<compile_context>
chip_gen: v7x
topology: tpu7x:2x2x1
jax: 0.10.0
libtpu: 0.0.40
codegen_flags: <defaults>
</compile_context>

<pallas_src>
import functools

import numpy as np
import jax
import jax.numpy as jnp
from jax.experimental import pallas as pl
from jax.experimental.pallas import tpu as pltpu


# ----------------------------- Pallas kernel ------------------------------ #
def pyramid_kernel(*refs, pooled_dims, cout):
    """Single grid step: whole batch, all pyramid paths.

    refs layout:
      refs[0]            : x      (N, C, H, W)          input (NCHW)
      refs[1 + 4*p + 0]  : kh_p   (Cout*ph, C*H)        kron(W_p, Ah_p) fused conv + H avg-pool
      refs[1 + 4*p + 1]  : awt_p  (W, pw)               Aw_p^T   W avg-pool (right-mult)
      refs[1 + 4*p + 2]  : uh_p   (H, ph)               Uh_p     H bilinear upsample (left-mult)
      refs[1 + 4*p + 3]  : uwt_p  (pw, W)               Uw_p^T   W bilinear upsample (right-mult)
      refs[-1]           : out    (N, C + P*Cout, H, W) identity channels + all path outputs
    """
    x_ref = refs[0]
    o_ref = refs[-1]
    op_refs = refs[1:-1]

    N, C, H, W = x_ref.shape
    NCH = N * C * H
    B = N * cout

    x = x_ref[...]                                          # (N, C, H, W) f32

    # identity branch of torch.cat written straight into the output slab
    o_ref[:, pl.ds(0, C), :, :] = x.astype(o_ref.dtype)

    # lane-safe collapse of leading dims only (minor dim W unchanged)
    x_rows = x.reshape(NCH, W)                              # (N*C*H, W)

    for p, (ph, pw) in enumerate(pooled_dims):              # static unroll over paths
        kh_ref, awt_ref, uh_ref, uwt_ref = op_refs[4 * p:4 * p + 4]
        kh = kh_ref[...]                                    # (Cout*ph, C*H)
        awt = awt_ref[...]                                  # (W, pw)
        uh = uh_ref[...]                                    # (H, ph)
        uwt = uwt_ref[...]                                  # (pw, W)

        # 1) avg-pool along W: one 2-D MXU matmul over all N*C*H rows
        a = jnp.dot(x_rows, awt,
                    preferred_element_type=jnp.float32)     # (N*C*H, pw)

        # 2) fused [1x1 conv x H avg-pool] (kron(W_p, Ah_p)), batched only over N
        a3 = a.reshape(N, C * H, pw)                        # split leading dim only
        t = jnp.einsum('bok,bkq->boq',
                       jnp.broadcast_to(kh, (N, cout * ph, C * H)), a3,
                       preferred_element_type=jnp.float32)  # (N, Cout*ph, pw)

        # 3) LeakyReLU(0.2)
        t = jnp.where(t >= 0.0, t, 0.2 * t)

        # 4) bilinear upsample along W: one 2-D MXU matmul over all N*Cout*ph rows
        u = jnp.dot(t.reshape(B * ph, pw), uwt,
                    preferred_element_type=jnp.float32)     # (N*Cout*ph, W)

        # 5) bilinear upsample along H, batched only over N*Cout
        u3 = u.reshape(B, ph, W)
        d = jnp.einsum('bhp,bpw->bhw',
                       jnp.broadcast_to(uh, (B, H, ph)), u3,
                       preferred_element_type=jnp.float32)  # (B, H, W)

        o_ref[:, pl.ds(C + p * cout, cout), :, :] = (
            d.reshape(N, cout, H, W).astype(o_ref.dtype))


# ----------------------------- matrix builders ----------------------------- #
def avg_pool_matrix(size, k):
    """avg_pool2d(kernel=k, stride=k, padding=0) along one axis as a matrix."""
    out = (size - k) // k + 1
    A = np.zeros((out, size), dtype=np.float32)
    for i in range(out):
        A[i, i * k:i * k + k] = 1.0 / k
    return A


def bilinear_matrix(out_size, in_size):
    """F.interpolate(mode='bilinear', align_corners=False) along one axis."""
    U = np.zeros((out_size, in_size), dtype=np.float32)
    scale = in_size / out_size
    for i in range(out_size):
        src = max((i + 0.5) * scale - 0.5, 0.0)
        i0 = min(int(np.floor(src)), in_size - 1)
        i1 = min(i0 + 1, in_size - 1)
        lam1 = src - i0
        U[i, i0] += 1.0 - lam1
        U[i, i1] += lam1
    return U


# ----------------------------- parameter setup ----------------------------- #
def init_pyramid_params(key, in_channels, pool_sizes):
    """Deterministic ConvBlock weights: Conv2d(in, in//P, 1, bias=False) + spectral norm."""
    n_paths = len(pool_sizes)
    out_ch = int(in_channels / n_paths)
    keys = jax.random.split(key, n_paths)
    ws = []
    for i in range(n_paths):
        bound = 1.0 / np.sqrt(in_channels)                  # kaiming-uniform, fan_in=C*1*1
        w = jax.random.uniform(keys[i], (out_ch, in_channels), jnp.float32,
                               minval=-bound, maxval=bound)
        w_np = np.asarray(w)
        # spectral_norm: divide by top singular value of the (out, in*k*k) matrix
        # (fixed point of PyTorch's power iteration; exact sigma used here).
        sigma = np.linalg.svd(w_np, compute_uv=False)[0]
        ws.append(w_np / sigma)
    return np.stack(ws, axis=0).astype(np.float32)          # (P, Cout, Cin)


# ------------------------------- wrapper ----------------------------------- #
def pyramid_pooling(x, weights, pool_sizes):
    """x: (N, C, H, W) float32 (NCHW).  Returns (N, C + P*Cout, H, W)."""
    N, C, H, W = x.shape
    P = len(pool_sizes)
    weights = np.asarray(weights, dtype=np.float32)          # (P, Cout, C)
    Cout = weights.shape[1]
    C_total = C + P * Cout

    # build per-axis pooling / upsample operators at exact per-path sizes (tiny, numpy)
    ops, dims = [], []
    for p, ps in enumerate(pool_sizes):
        k = int(H / ps)              # module uses the same kernel/stride (from H) on both axes
        Ah = avg_pool_matrix(H, k)
        Aw = avg_pool_matrix(W, k)
        ph, pw = Ah.shape[0], Aw.shape[0]
        Uh = bilinear_matrix(H, ph)
        Uw = bilinear_matrix(W, pw)
        dims.append((ph, pw))
        ops += [
            np.kron(weights[p], Ah).astype(np.float32),      # (Cout*ph, C*H) fused conv+H-pool
            np.ascontiguousarray(Aw.T).astype(np.float32),   # (W, pw)
            Uh.astype(np.float32),                           # (H, ph)
            np.ascontiguousarray(Uw.T).astype(np.float32),   # (pw, W)
        ]

    kernel = functools.partial(pyramid_kernel, pooled_dims=tuple(dims), cout=Cout)

    def full_spec(shape):
        nd = len(shape)
        return pl.BlockSpec(shape, lambda i, _nd=nd: (0,) * _nd)

    in_specs = [full_spec((N, C, H, W))] + [full_spec(a.shape) for a in ops]

    out = pl.pallas_call(
        kernel,
        out_shape=jax.ShapeDtypeStruct((N, C_total, H, W), jnp.float32),
        grid_spec=pltpu.PrefetchScalarGridSpec(
            num_scalar_prefetch=0,
            grid=(1,),                                       # single step: all N, all P paths
            in_specs=in_specs,
            out_specs=full_spec((N, C_total, H, W)),
        ),
        compiler_params=pltpu.CompilerParams(
            dimension_semantics=("arbitrary",)),
    )(x, *[jnp.asarray(a) for a in ops])
    return out


# ------------------------------- reference --------------------------------- #
def pyramid_pooling_ref(x, weights, pool_sizes):
    N, C, H, W = x.shape
    outs = [x]
    for i, ps in enumerate(pool_sizes):
        k = int(H / ps)
        Ah = jnp.asarray(avg_pool_matrix(H, k))
        Aw = jnp.asarray(avg_pool_matrix(W, k))
        Uh = jnp.asarray(bilinear_matrix(H, Ah.shape[0]))
        Uw = jnp.asarray(bilinear_matrix(W, Aw.shape[0]))
        pooled = jnp.einsum('ph,nchw,qw->ncpq', Ah, x, Aw)
        y = jnp.einsum('oc,ncpq->nopq', jnp.asarray(weights[i]), pooled)
        y = jnp.where(y >= 0, y, 0.2 * y)
        up = jnp.einsum('hp,nopq,wq->nohw', Uh, y, Uw)
        outs.append(up)
    return jnp.concatenate(outs, axis=1)


if __name__ == "__main__":
    key = jax.random.PRNGKey(0)
    kx, kw = jax.random.split(key)

    N, C, H, W = 2, 4, 16, 16
    pool_sizes = [1, 2, 4, 8]

    x = jax.random.normal(kx, (N, C, H, W), jnp.float32)
    weights = init_pyramid_params(kw, C, pool_sizes)        # (P, Cout=1, C)

    out = jax.block_until_ready(pyramid_pooling(x, weights, pool_sizes))
    ref = jax.block_until_ready(pyramid_pooling_ref(x, weights, pool_sizes))

    assert out.shape == (N, C + len(pool_sizes) * weights.shape[1], H, W)
    assert np.allclose(np.asarray(out), np.asarray(ref), atol=1e-4, rtol=1e-4)

    print("KERNEL_OK")
</pallas_src>

<mosaic_0001>
module attributes {stable_mosaic.version = 11 : i64} {
  func.func @pyramid_kernel(%arg0: i32, %arg1: memref<2x4x16x16xf32, #tpu.memory_space<vmem>>, %arg2: memref<1x64xf32, #tpu.memory_space<vmem>>, %arg3: memref<16x1xf32, #tpu.memory_space<vmem>>, %arg4: memref<16x1xf32, #tpu.memory_space<vmem>>, %arg5: memref<1x16xf32, #tpu.memory_space<vmem>>, %arg6: memref<2x64xf32, #tpu.memory_space<vmem>>, %arg7: memref<16x2xf32, #tpu.memory_space<vmem>>, %arg8: memref<16x2xf32, #tpu.memory_space<vmem>>, %arg9: memref<2x16xf32, #tpu.memory_space<vmem>>, %arg10: memref<4x64xf32, #tpu.memory_space<vmem>>, %arg11: memref<16x4xf32, #tpu.memory_space<vmem>>, %arg12: memref<16x4xf32, #tpu.memory_space<vmem>>, %arg13: memref<4x16xf32, #tpu.memory_space<vmem>>, %arg14: memref<8x64xf32, #tpu.memory_space<vmem>>, %arg15: memref<16x8xf32, #tpu.memory_space<vmem>>, %arg16: memref<16x8xf32, #tpu.memory_space<vmem>>, %arg17: memref<8x16xf32, #tpu.memory_space<vmem>>, %arg18: memref<2x8x16x16xf32, #tpu.memory_space<vmem>>) attributes {dimension_semantics = [#tpu.dimension_semantics<arbitrary>], iteration_bounds = array<i64: 1>, scalar_prefetch = 0 : i64, scratch_operands = 0 : i64, tpu.core_type = #tpu.core_type<tc>, window_params = [{pipeline_mode = #tpu.pipeline_mode<synchronous>, transform_indices = @transform_0, window_bounds = array<i64: 2, 4, 16, 16>}, {pipeline_mode = #tpu.pipeline_mode<synchronous>, transform_indices = @transform_1, window_bounds = array<i64: 1, 64>}, {pipeline_mode = #tpu.pipeline_mode<synchronous>, transform_indices = @transform_2, window_bounds = array<i64: 16, 1>}, {pipeline_mode = #tpu.pipeline_mode<synchronous>, transform_indices = @transform_3, window_bounds = array<i64: 16, 1>}, {pipeline_mode = #tpu.pipeline_mode<synchronous>, transform_indices = @transform_4, window_bounds = array<i64: 1, 16>}, {pipeline_mode = #tpu.pipeline_mode<synchronous>, transform_indices = @transform_5, window_bounds = array<i64: 2, 64>}, {pipeline_mode = #tpu.pipeline_mode<synchronous>, transform_indices = @transform_6, window_bounds = array<i64: 16, 2>}, {pipeline_mode = #tpu.pipeline_mode<synchronous>, transform_indices = @transform_7, window_bounds = array<i64: 16, 2>}, {pipeline_mode = #tpu.pipeline_mode<synchronous>, transform_indices = @transform_8, window_bounds = array<i64: 2, 16>}, {pipeline_mode = #tpu.pipeline_mode<synchronous>, transform_indices = @transform_9, window_bounds = array<i64: 4, 64>}, {pipeline_mode = #tpu.pipeline_mode<synchronous>, transform_indices = @transform_10, window_bounds = array<i64: 16, 4>}, {pipeline_mode = #tpu.pipeline_mode<synchronous>, transform_indices = @transform_11, window_bounds = array<i64: 16, 4>}, {pipeline_mode = #tpu.pipeline_mode<synchronous>, transform_indices = @transform_12, window_bounds = array<i64: 4, 16>}, {pipeline_mode = #tpu.pipeline_mode<synchronous>, transform_indices = @transform_13, window_bounds = array<i64: 8, 64>}, {pipeline_mode = #tpu.pipeline_mode<synchronous>, transform_indices = @transform_14, window_bounds = array<i64: 16, 8>}, {pipeline_mode = #tpu.pipeline_mode<synchronous>, transform_indices = @transform_15, window_bounds = array<i64: 16, 8>}, {pipeline_mode = #tpu.pipeline_mode<synchronous>, transform_indices = @transform_16, window_bounds = array<i64: 8, 16>}, {pipeline_mode = #tpu.pipeline_mode<synchronous>, transform_indices = @transform_17, window_bounds = array<i64: 2, 8, 16, 16>}]} {
    %c0 = arith.constant 0 : index
    %c0_0 = arith.constant 0 : index
    %c0_1 = arith.constant 0 : index
    %c0_2 = arith.constant 0 : index
    %0 = vector.load %arg1[%c0, %c0_0, %c0_1, %c0_2] : memref<2x4x16x16xf32, #tpu.memory_space<vmem>>, vector<2x4x16x16xf32>
    %c0_3 = arith.constant 0 : index
    %c0_4 = arith.constant 0 : index
    %c0_5 = arith.constant 0 : index
    %c0_6 = arith.constant 0 : index
    %1 = vector.load %arg18[%c0_3, %c0_4, %c0_5, %c0_6] : memref<2x8x16x16xf32, #tpu.memory_space<vmem>>, vector<2x4x16x16xf32>
    tpu.vector_store %arg18[%c0_3, %c0_4, %c0_5, %c0_6], %0 {strides = array<i32>} : memref<2x8x16x16xf32, #tpu.memory_space<vmem>>, vector<2x4x16x16xf32>,
    %2 = vector.shape_cast %0 : vector<2x4x16x16xf32> to vector<128x16xf32>
    %c0_7 = arith.constant 0 : index
    %c0_8 = arith.constant 0 : index
    %3 = vector.load %arg2[%c0_7, %c0_8] : memref<1x64xf32, #tpu.memory_space<vmem>>, vector<1x64xf32>
    %c0_9 = arith.constant 0 : index
    %c0_10 = arith.constant 0 : index
    %4 = vector.load %arg3[%c0_9, %c0_10] : memref<16x1xf32, #tpu.memory_space<vmem>>, vector<16x1xf32>
    %c0_11 = arith.constant 0 : index
    %c0_12 = arith.constant 0 : index
    %5 = vector.load %arg4[%c0_11, %c0_12] : memref<16x1xf32, #tpu.memory_space<vmem>>, vector<16x1xf32>
    %c0_13 = arith.constant 0 : index
    %c0_14 = arith.constant 0 : index
    %6 = vector.load %arg5[%c0_13, %c0_14] : memref<1x16xf32, #tpu.memory_space<vmem>>, vector<1x16xf32>
    %cst = arith.constant dense<0.000000e+00> : vector<128x1xf32>
    %7 = tpu.matmul %2, %4, %cst {dimension_numbers = #tpu.dot_dimension_numbers<[1], [0], [0], [1], [0, 0, 1, 1], [], []>} : vector<128x16xf32>, vector<16x1xf32>, vector<128x1xf32> -> vector<128x1xf32>
    %8 = vector.shape_cast %7 : vector<128x1xf32> to vector<2x64x1xf32>
    %9 = vector.shape_cast %3 : vector<1x64xf32> to vector<1x1x64xf32>
    %10 = vector.broadcast %9 : vector<1x1x64xf32> to vector<2x1x64xf32>
    "tpu.trace_start"() <{level = 10 : i32, message = "bok,bkq->boq"}> : () -> ()
    %cst_15 = arith.constant dense<0.000000e+00> : vector<2x1x1xf32>
    %11 = tpu.matmul %10, %8, %cst_15 {dimension_numbers = #tpu.dot_dimension_numbers<[2], [1], [1], [2], [0, 0, 0, 1, 1, 2], [0], [0]>} : vector<2x1x64xf32>, vector<2x64x1xf32>, vector<2x1x1xf32> -> vector<2x1x1xf32>
    %cst_16 = arith.constant 0.000000e+00 : f32
    "tpu.trace_stop"() : () -> ()
    %12 = vector.broadcast %cst_16 : f32 to vector<2x1x1xf32>
    %13 = arith.cmpf oge, %11, %12 : vector<2x1x1xf32>
    %cst_17 = arith.constant 2.000000e-01 : f32
    %14 = vector.broadcast %cst_17 : f32 to vector<2x1x1xf32>
    %15 = arith.mulf %14, %11 : vector<2x1x1xf32>
    %16 = arith.select %13, %11, %15 : vector<2x1x1xi1>, vector<2x1x1xf32>
    %17 = vector.shape_cast %16 : vector<2x1x1xf32> to vector<2x1xf32>
    %cst_18 = arith.constant dense<0.000000e+00> : vector<2x16xf32>
    %18 = tpu.matmul %17, %6, %cst_18 {dimension_numbers = #tpu.dot_dimension_numbers<[1], [0], [0], [1], [0, 0, 1, 1], [], []>} : vector<2x1xf32>, vector<1x16xf32>, vector<2x16xf32> -> vector<2x16xf32>
    %19 = vector.shape_cast %18 : vector<2x16xf32> to vector<2x1x16xf32>
    %20 = vector.shape_cast %5 : vector<16x1xf32> to vector<1x16x1xf32>
    %21 = vector.broadcast %20 : vector<1x16x1xf32> to vector<2x16x1xf32>
    "tpu.trace_start"() <{level = 10 : i32, message = "bhp,bpw->bhw"}> : () -> ()
    %cst_19 = arith.constant dense<0.000000e+00> : vector<2x16x16xf32>
    %22 = tpu.matmul %21, %19, %cst_19 {dimension_numbers = #tpu.dot_dimension_numbers<[2], [1], [1], [2], [0, 0, 0, 1, 1, 2], [0], [0]>} : vector<2x16x1xf32>, vector<2x1x16xf32>, vector<2x16x16xf32> -> vector<2x16x16xf32>
    "tpu.trace_stop"() : () -> ()
    %23 = vector.shape_cast %22 : vector<2x16x16xf32> to vector<2x1x16x16xf32>
    %c0_20 = arith.constant 0 : index
    %c4 = arith.constant 4 : index
    %c0_21 = arith.constant 0 : index
    %c0_22 = arith.constant 0 : index
    %24 = vector.load %arg18[%c0_20, %c4, %c0_21, %c0_22] : memref<2x8x16x16xf32, #tpu.memory_space<vmem>>, vector<2x1x16x16xf32>
    tpu.vector_store %arg18[%c0_20, %c4, %c0_21, %c0_22], %23 {strides = array<i32>} : memref<2x8x16x16xf32, #tpu.memory_space<vmem>>, vector<2x1x16x16xf32>,
    %c0_23 = arith.constant 0 : index
    %c0_24 = arith.constant 0 : index
    %25 = vector.load %arg6[%c0_23, %c0_24] : memref<2x64xf32, #tpu.memory_space<vmem>>, vector<2x64xf32>
    %c0_25 = arith.constant 0 : index
    %c0_26 = arith.constant 0 : index
    %26 = vector.load %arg7[%c0_25, %c0_26] : memref<16x2xf32, #tpu.memory_space<vmem>>, vector<16x2xf32>
    %c0_27 = arith.constant 0 : index
    %c0_28 = arith.constant 0 : index
    %27 = vector.load %arg8[%c0_27, %c0_28] : memref<16x2xf32, #tpu.memory_space<vmem>>, vector<16x2xf32>
    %c0_29 = arith.constant 0 : index
    %c0_30 = arith.constant 0 : index
    %28 = vector.load %arg9[%c0_29, %c0_30] : memref<2x16xf32, #tpu.memory_space<vmem>>, vector<2x16xf32>
    %cst_31 = arith.constant dense<0.000000e+00> : vector<128x2xf32>
    %29 = tpu.matmul %2, %26, %cst_31 {dimension_numbers = #tpu.dot_dimension_numbers<[1], [0], [0], [1], [0, 0, 1, 1], [], []>} : vector<128x16xf32>, vector<16x2xf32>, vector<128x2xf32> -> vector<128x2xf32>
    %30 = vector.shape_cast %29 : vector<128x2xf32> to vector<2x64x2xf32>
    %31 = vector.shape_cast %25 : vector<2x64xf32> to vector<1x2x64xf32>
    %32 = vector.broadcast %31 : vector<1x2x64xf32> to vector<2x2x64xf32>
    "tpu.trace_start"() <{level = 10 : i32, message = "bok,bkq->boq"}> : () -> ()
    %cst_32 = arith.constant dense<0.000000e+00> : vector<2x2x2xf32>
    %33 = tpu.matmul %32, %30, %cst_32 {dimension_numbers = #tpu.dot_dimension_numbers<[2], [1], [1], [2], [0, 0, 0, 1, 1, 2], [0], [0]>} : vector<2x2x64xf32>, vector<2x64x2xf32>, vector<2x2x2xf32> -> vector<2x2x2xf32>
    %cst_33 = arith.constant 0.000000e+00 : f32
    "tpu.trace_stop"() : () -> ()
    %34 = vector.broadcast %cst_33 : f32 to vector<2x2x2xf32>
    %35 = arith.cmpf oge, %33, %34 : vector<2x2x2xf32>
    %cst_34 = arith.constant 2.000000e-01 : f32
    %36 = vector.broadcast %cst_34 : f32 to vector<2x2x2xf32>
    %37 = arith.mulf %36, %33 : vector<2x2x2xf32>
    %38 = arith.select %35, %33, %37 : vector<2x2x2xi1>, vector<2x2x2xf32>
    %39 = vector.shape_cast %38 : vector<2x2x2xf32> to vector<4x2xf32>
    %cst_35 = arith.constant dense<0.000000e+00> : vector<4x16xf32>
    %40 = tpu.matmul %39, %28, %cst_35 {dimension_numbers = #tpu.dot_dimension_numbers<[1], [0], [0], [1], [0, 0, 1, 1], [], []>} : vector<4x2xf32>, vector<2x16xf32>, vector<4x16xf32> -> vector<4x16xf32>
    %41 = vector.shape_cast %40 : vector<4x16xf32> to vector<2x2x16xf32>
    %42 = vector.shape_cast %27 : vector<16x2xf32> to vector<1x16x2xf32>
    %43 = vector.broadcast %42 : vector<1x16x2xf32> to vector<2x16x2xf32>
    "tpu.trace_start"() <{level = 10 : i32, message = "bhp,bpw->bhw"}> : () -> ()
    %cst_36 = arith.constant dense<0.000000e+00> : vector<2x16x16xf32>
    %44 = tpu.matmul %43, %41, %cst_36 {dimension_numbers = #tpu.dot_dimension_numbers<[2], [1], [1], [2], [0, 0, 0, 1, 1, 2], [0], [0]>} : vector<2x16x2xf32>, vector<2x2x16xf32>, vector<2x16x16xf32> -> vector<2x16x16xf32>
    "tpu.trace_stop"() : () -> ()
    %45 = vector.shape_cast %44 : vector<2x16x16xf32> to vector<2x1x16x16xf32>
    %c0_37 = arith.constant 0 : index
    %c5 = arith.constant 5 : index
    %c0_38 = arith.constant 0 : index
    %c0_39 = arith.constant 0 : index
    %46 = vector.load %arg18[%c0_37, %c5, %c0_38, %c0_39] : memref<2x8x16x16xf32, #tpu.memory_space<vmem>>, vector<2x1x16x16xf32>
    tpu.vector_store %arg18[%c0_37, %c5, %c0_38, %c0_39], %45 {strides = array<i32>} : memref<2x8x16x16xf32, #tpu.memory_space<vmem>>, vector<2x1x16x16xf32>,
    %c0_40 = arith.constant 0 : index
    %c0_41 = arith.constant 0 : index
    %47 = vector.load %arg10[%c0_40, %c0_41] : memref<4x64xf32, #tpu.memory_space<vmem>>, vector<4x64xf32>
    %c0_42 = arith.constant 0 : index
    %c0_43 = arith.constant 0 : index
    %48 = vector.load %arg11[%c0_42, %c0_43] : memref<16x4xf32, #tpu.memory_space<vmem>>, vector<16x4xf32>
    %c0_44 = arith.constant 0 : index
    %c0_45 = arith.constant 0 : index
    %49 = vector.load %arg12[%c0_44, %c0_45] : memref<16x4xf32, #tpu.memory_space<vmem>>, vector<16x4xf32>
    %c0_46 = arith.constant 0 : index
    %c0_47 = arith.constant 0 : index
    %50 = vector.load %arg13[%c0_46, %c0_47] : memref<4x16xf32, #tpu.memory_space<vmem>>, vector<4x16xf32>
    %cst_48 = arith.constant dense<0.000000e+00> : vector<128x4xf32>
    %51 = tpu.matmul %2, %48, %cst_48 {dimension_numbers = #tpu.dot_dimension_numbers<[1], [0], [0], [1], [0, 0, 1, 1], [], []>} : vector<128x16xf32>, vector<16x4xf32>, vector<128x4xf32> -> vector<128x4xf32>
    %52 = vector.shape_cast %51 : vector<128x4xf32> to vector<2x64x4xf32>
    %53 = vector.shape_cast %47 : vector<4x64xf32> to vector<1x4x64xf32>
    %54 = vector.broadcast %53 : vector<1x4x64xf32> to vector<2x4x64xf32>
    "tpu.trace_start"() <{level = 10 : i32, message = "bok,bkq->boq"}> : () -> ()
    %cst_49 = arith.constant dense<0.000000e+00> : vector<2x4x4xf32>
    %55 = tpu.matmul %54, %52, %cst_49 {dimension_numbers = #tpu.dot_dimension_numbers<[2], [1], [1], [2], [0, 0, 0, 1, 1, 2], [0], [0]>} : vector<2x4x64xf32>, vector<2x64x4xf32>, vector<2x4x4xf32> -> vector<2x4x4xf32>
    %cst_50 = arith.constant 0.000000e+00 : f32
    "tpu.trace_stop"() : () -> ()
    %56 = vector.broadcast %cst_50 : f32 to vector<2x4x4xf32>
    %57 = arith.cmpf oge, %55, %56 : vector<2x4x4xf32>
    %cst_51 = arith.constant 2.000000e-01 : f32
    %58 = vector.broadcast %cst_51 : f32 to vector<2x4x4xf32>
    %59 = arith.mulf %58, %55 : vector<2x4x4xf32>
    %60 = arith.select %57, %55, %59 : vector<2x4x4xi1>, vector<2x4x4xf32>
    %61 = vector.shape_cast %60 : vector<2x4x4xf32> to vector<8x4xf32>
    %cst_52 = arith.constant dense<0.000000e+00> : vector<8x16xf32>
    %62 = tpu.matmul %61, %50, %cst_52 {dimension_numbers = #tpu.dot_dimension_numbers<[1], [0], [0], [1], [0, 0, 1, 1], [], []>} : vector<8x4xf32>, vector<4x16xf32>, vector<8x16xf32> -> vector<8x16xf32>
    %63 = vector.shape_cast %62 : vector<8x16xf32> to vector<2x4x16xf32>
    %64 = vector.shape_cast %49 : vector<16x4xf32> to vector<1x16x4xf32>
    %65 = vector.broadcast %64 : vector<1x16x4xf32> to vector<2x16x4xf32>
    "tpu.trace_start"() <{level = 10 : i32, message = "bhp,bpw->bhw"}> : () -> ()
    %cst_53 = arith.constant dense<0.000000e+00> : vector<2x16x16xf32>
    %66 = tpu.matmul %65, %63, %cst_53 {dimension_numbers = #tpu.dot_dimension_numbers<[2], [1], [1], [2], [0, 0, 0, 1, 1, 2], [0], [0]>} : vector<2x16x4xf32>, vector<2x4x16xf32>, vector<2x16x16xf32> -> vector<2x16x16xf32>
    "tpu.trace_stop"() : () -> ()
    %67 = vector.shape_cast %66 : vector<2x16x16xf32> to vector<2x1x16x16xf32>
    %c0_54 = arith.constant 0 : index
    %c6 = arith.constant 6 : index
    %c0_55 = arith.constant 0 : index
    %c0_56 = arith.constant 0 : index
    %68 = vector.load %arg18[%c0_54, %c6, %c0_55, %c0_56] : memref<2x8x16x16xf32, #tpu.memory_space<vmem>>, vector<2x1x16x16xf32>
    tpu.vector_store %arg18[%c0_54, %c6, %c0_55, %c0_56], %67 {strides = array<i32>} : memref<2x8x16x16xf32, #tpu.memory_space<vmem>>, vector<2x1x16x16xf32>,
    %c0_57 = arith.constant 0 : index
    %c0_58 = arith.constant 0 : index
    %69 = vector.load %arg14[%c0_57, %c0_58] : memref<8x64xf32, #tpu.memory_space<vmem>>, vector<8x64xf32>
    %c0_59 = arith.constant 0 : index
    %c0_60 = arith.constant 0 : index
    %70 = vector.load %arg15[%c0_59, %c0_60] : memref<16x8xf32, #tpu.memory_space<vmem>>, vector<16x8xf32>
    %c0_61 = arith.constant 0 : index
    %c0_62 = arith.constant 0 : index
    %71 = vector.load %arg16[%c0_61, %c0_62] : memref<16x8xf32, #tpu.memory_space<vmem>>, vector<16x8xf32>
    %c0_63 = arith.constant 0 : index
    %c0_64 = arith.constant 0 : index
    %72 = vector.load %arg17[%c0_63, %c0_64] : memref<8x16xf32, #tpu.memory_space<vmem>>, vector<8x16xf32>
    %cst_65 = arith.constant dense<0.000000e+00> : vector<128x8xf32>
    %73 = tpu.matmul %2, %70, %cst_65 {dimension_numbers = #tpu.dot_dimension_numbers<[1], [0], [0], [1], [0, 0, 1, 1], [], []>} : vector<128x16xf32>, vector<16x8xf32>, vector<128x8xf32> -> vector<128x8xf32>
    %74 = vector.shape_cast %73 : vector<128x8xf32> to vector<2x64x8xf32>
    %75 = vector.shape_cast %69 : vector<8x64xf32> to vector<1x8x64xf32>
    %76 = vector.broadcast %75 : vector<1x8x64xf32> to vector<2x8x64xf32>
    "tpu.trace_start"() <{level = 10 : i32, message = "bok,bkq->boq"}> : () -> ()
    %cst_66 = arith.constant dense<0.000000e+00> : vector<2x8x8xf32>
    %77 = tpu.matmul %76, %74, %cst_66 {dimension_numbers = #tpu.dot_dimension_numbers<[2], [1], [1], [2], [0, 0, 0, 1, 1, 2], [0], [0]>} : vector<2x8x64xf32>, vector<2x64x8xf32>, vector<2x8x8xf32> -> vector<2x8x8xf32>
    %cst_67 = arith.constant 0.000000e+00 : f32
    "tpu.trace_stop"() : () -> ()
    %78 = vector.broadcast %cst_67 : f32 to vector<2x8x8xf32>
    %79 = arith.cmpf oge, %77, %78 : vector<2x8x8xf32>
    %cst_68 = arith.constant 2.000000e-01 : f32
    %80 = vector.broadcast %cst_68 : f32 to vector<2x8x8xf32>
    %81 = arith.mulf %80, %77 : vector<2x8x8xf32>
    %82 = arith.select %79, %77, %81 : vector<2x8x8xi1>, vector<2x8x8xf32>
    %83 = vector.shape_cast %82 : vector<2x8x8xf32> to vector<16x8xf32>
    %cst_69 = arith.constant dense<0.000000e+00> : vector<16x16xf32>
    %84 = tpu.matmul %83, %72, %cst_69 {dimension_numbers = #tpu.dot_dimension_numbers<[1], [0], [0], [1], [0, 0, 1, 1], [], []>} : vector<16x8xf32>, vector<8x16xf32>, vector<16x16xf32> -> vector<16x16xf32>
    %85 = vector.shape_cast %84 : vector<16x16xf32> to vector<2x8x16xf32>
    %86 = vector.shape_cast %71 : vector<16x8xf32> to vector<1x16x8xf32>
    %87 = vector.broadcast %86 : vector<1x16x8xf32> to vector<2x16x8xf32>
    "tpu.trace_start"() <{level = 10 : i32, message = "bhp,bpw->bhw"}> : () -> ()
    %cst_70 = arith.constant dense<0.000000e+00> : vector<2x16x16xf32>
    %88 = tpu.matmul %87, %85, %cst_70 {dimension_numbers = #tpu.dot_dimension_numbers<[2], [1], [1], [2], [0, 0, 0, 1, 1, 2], [0], [0]>} : vector<2x16x8xf32>, vector<2x8x16xf32>, vector<2x16x16xf32> -> vector<2x16x16xf32>
    "tpu.trace_stop"() : () -> ()
    %89 = vector.shape_cast %88 : vector<2x16x16xf32> to vector<2x1x16x16xf32>
    %c0_71 = arith.constant 0 : index
    %c7 = arith.constant 7 : index
    %c0_72 = arith.constant 0 : index
    %c0_73 = arith.constant 0 : index
    %90 = vector.load %arg18[%c0_71, %c7, %c0_72, %c0_73] : memref<2x8x16x16xf32, #tpu.memory_space<vmem>>, vector<2x1x16x16xf32>
    tpu.vector_store %arg18[%c0_71, %c7, %c0_72, %c0_73], %89 {strides = array<i32>} : memref<2x8x16x16xf32, #tpu.memory_space<vmem>>, vector<2x1x16x16xf32>,
    return
  }
  func.func @transform_0(%arg0: i32) -> (i32, i32, i32, i32) {
    %c0_i32 = arith.constant 0 : i32
    %c0_i32_0 = arith.constant 0 : i32
    %c0_i32_1 = arith.constant 0 : i32
    %c0_i32_2 = arith.constant 0 : i32
    %c0_i32_3 = arith.constant 0 : i32
    return %c0_i32, %c0_i32_0, %c0_i32_1, %c0_i32_2 : i32, i32, i32, i32
  }
  func.func @transform_1(%arg0: i32) -> (i32, i32) {
    %c0_i32 = arith.constant 0 : i32
    %c0_i32_0 = arith.constant 0 : i32
    %c0_i32_1 = arith.constant 0 : i32
    return %c0_i32, %c0_i32_0 : i32, i32
  }
  func.func @transform_2(%arg0: i32) -> (i32, i32) {
    %c0_i32 = arith.constant 0 : i32
    %c0_i32_0 = arith.constant 0 : i32
    %c0_i32_1 = arith.constant 0 : i32
    return %c0_i32, %c0_i32_0 : i32, i32
  }
  func.func @transform_3(%arg0: i32) -> (i32, i32) {
    %c0_i32 = arith.constant 0 : i32
    %c0_i32_0 = arith.constant 0 : i32
    %c0_i32_1 = arith.constant 0 : i32
    return %c0_i32, %c0_i32_0 : i32, i32
  }
  func.func @transform_4(%arg0: i32) -> (i32, i32) {
    %c0_i32 = arith.constant 0 : i32
    %c0_i32_0 = arith.constant 0 : i32
    %c0_i32_1 = arith.constant 0 : i32
    return %c0_i32, %c0_i32_0 : i32, i32
  }
  func.func @transform_5(%arg0: i32) -> (i32, i32) {
    %c0_i32 = arith.constant 0 : i32
    %c0_i32_0 = arith.constant 0 : i32
    %c0_i32_1 = arith.constant 0 : i32
    return %c0_i32, %c0_i32_0 : i32, i32
  }
  func.func @transform_6(%arg0: i32) -> (i32, i32) {
    %c0_i32 = arith.constant 0 : i32
    %c0_i32_0 = arith.constant 0 : i32
    %c0_i32_1 = arith.constant 0 : i32
    return %c0_i32, %c0_i32_0 : i32, i32
  }
  func.func @transform_7(%arg0: i32) -> (i32, i32) {
    %c0_i32 = arith.constant 0 : i32
    %c0_i32_0 = arith.constant 0 : i32
    %c0_i32_1 = arith.constant 0 : i32
    return %c0_i32, %c0_i32_0 : i32, i32
  }
  func.func @transform_8(%arg0: i32) -> (i32, i32) {
    %c0_i32 = arith.constant 0 : i32
    %c0_i32_0 = arith.constant 0 : i32
    %c0_i32_1 = arith.constant 0 : i32
    return %c0_i32, %c0_i32_0 : i32, i32
  }
  func.func @transform_9(%arg0: i32) -> (i32, i32) {
    %c0_i32 = arith.constant 0 : i32
    %c0_i32_0 = arith.constant 0 : i32
    %c0_i32_1 = arith.constant 0 : i32
    return %c0_i32, %c0_i32_0 : i32, i32
  }
  func.func @transform_10(%arg0: i32) -> (i32, i32) {
    %c0_i32 = arith.constant 0 : i32
    %c0_i32_0 = arith.constant 0 : i32
    %c0_i32_1 = arith.constant 0 : i32
    return %c0_i32, %c0_i32_0 : i32, i32
  }
  func.func @transform_11(%arg0: i32) -> (i32, i32) {
    %c0_i32 = arith.constant 0 : i32
    %c0_i32_0 = arith.constant 0 : i32
    %c0_i32_1 = arith.constant 0 : i32
    return %c0_i32, %c0_i32_0 : i32, i32
  }
  func.func @transform_12(%arg0: i32) -> (i32, i32) {
    %c0_i32 = arith.constant 0 : i32
    %c0_i32_0 = arith.constant 0 : i32
    %c0_i32_1 = arith.constant 0 : i32
    return %c0_i32, %c0_i32_0 : i32, i32
  }
  func.func @transform_13(%arg0: i32) -> (i32, i32) {
    %c0_i32 = arith.constant 0 : i32
    %c0_i32_0 = arith.constant 0 : i32
    %c0_i32_1 = arith.constant 0 : i32
    return %c0_i32, %c0_i32_0 : i32, i32
  }
  func.func @transform_14(%arg0: i32) -> (i32, i32) {
    %c0_i32 = arith.constant 0 : i32
    %c0_i32_0 = arith.constant 0 : i32
    %c0_i32_1 = arith.constant 0 : i32
    return %c0_i32, %c0_i32_0 : i32, i32
  }
  func.func @transform_15(%arg0: i32) -> (i32, i32) {
    %c0_i32 = arith.constant 0 : i32
    %c0_i32_0 = arith.constant 0 : i32
    %c0_i32_1 = arith.constant 0 : i32
    return %c0_i32, %c0_i32_0 : i32, i32
  }
  func.func @transform_16(%arg0: i32) -> (i32, i32) {
    %c0_i32 = arith.constant 0 : i32
    %c0_i32_0 = arith.constant 0 : i32
    %c0_i32_1 = arith.constant 0 : i32
    return %c0_i32, %c0_i32_0 : i32, i32
  }
  func.func @transform_17(%arg0: i32) -> (i32, i32, i32, i32) {
    %c0_i32 = arith.constant 0 : i32
    %c0_i32_0 = arith.constant 0 : i32
    %c0_i32_1 = arith.constant 0 : i32
    %c0_i32_2 = arith.constant 0 : i32
    %c0_i32_3 = arith.constant 0 : i32
    return %c0_i32, %c0_i32_0, %c0_i32_1, %c0_i32_2 : i32, i32, i32, i32
  }
}

</mosaic_0001>

<llo_original>
// kernel: tpu_custom_call.1
$region0: #{tpu_custom_call.1}
  #allocation0 [shape = 'u32[]', space=smem, size = 0x4, offset = 0x4, fixed_abs, tag = 'smem constant byte address 0x4 - core index']
  #allocation1 [shape = 'u32[144,128]{1,0:T(1,128)}', space=vmem, size = 0x12000, scoped, tag = 'internal scratch']
  %s0 = inlined_call_operand.vmem [shape: f32[2,4,16,16], index: 0, kind: input, shape index: {}]
  %s1 = inlined_call_operand.hbm [shape: f32[1,64], index: 1, kind: input, shape index: {}]
  %s2 = inlined_call_operand.vmem [shape: f32[16,1], index: 2, kind: input, shape index: {}]
  %s3 = inlined_call_operand.vmem [shape: f32[16,1], index: 3, kind: input, shape index: {}]
  %s4 = inlined_call_operand.hbm [shape: f32[1,16], index: 4, kind: input, shape index: {}]
  %s5 = inlined_call_operand.hbm [shape: f32[2,64], index: 5, kind: input, shape index: {}]
  %s6 = inlined_call_operand.vmem [shape: f32[16,2], index: 6, kind: input, shape index: {}]
  %s7 = inlined_call_operand.vmem [shape: f32[16,2], index: 7, kind: input, shape index: {}]
  %s8 = inlined_call_operand.vmem [shape: f32[2,16], index: 8, kind: input, shape index: {}]
  %s9 = inlined_call_operand.vmem [shape: f32[4,64], index: 9, kind: input, shape index: {}]
  %s10 = inlined_call_operand.vmem [shape: f32[16,4], index: 10, kind: input, shape index: {}]
  %s11 = inlined_call_operand.vmem [shape: f32[16,4], index: 11, kind: input, shape index: {}]
  %s12 = inlined_call_operand.vmem [shape: f32[4,16], index: 12, kind: input, shape index: {}]
  %s13 = inlined_call_operand.vmem [shape: f32[8,64], index: 13, kind: input, shape index: {}]
  %s14 = inlined_call_operand.vmem [shape: f32[16,8], index: 14, kind: input, shape index: {}]
  %s15 = inlined_call_operand.vmem [shape: f32[16,8], index: 15, kind: input, shape index: {}]
  %s16 = inlined_call_operand.vmem [shape: f32[8,16], index: 16, kind: input, shape index: {}]
  %s17 = inlined_call_operand.hbm [shape: f32[2,8,16,16], index: 17, kind: output, shape index: {}]
  %s18 = sld [smem:[#allocation0]]
  $region90: #{tpu_custom_call.1} parent=0
    _
  %s20 = ssub.s32 1, %s18
  %s21 = scalar_select 0, %s20, %s18
  $region1: #{tpu_custom_call.1} parent=0
    #allocation2 [shape = 'u8[512]{0}', space=vmem, size = 0x400, scoped, tag = 'input window, operand 1, single buffered']
    #allocation3 [shape = 's32[1]{0}', space=sflag, size = 0x4, scoped, tag = 'scoped memory for tpu_custom_call.1']
    #allocation4 [shape = 's32[1]{0}', space=sflag, size = 0x4, scoped, tag = 'scoped memory for tpu_custom_call.1']
    #allocation5 [shape = 'u8[512]{0}', space=vmem, size = 0x400, scoped, tag = 'input window, operand 4, single buffered']
    #allocation6 [shape = 's32[1]{0}', space=sflag, size = 0x4, scoped, tag = 'scoped memory for tpu_custom_call.1']
    #allocation7 [shape = 'u8[1024]{0}', space=vmem, size = 0x400, scoped, tag = 'input window, operand 5, single buffered']
    #allocation8 [shape = 'u8[131072]{0}', space=vmem, size = 0x20000, scoped, tag = 'output window, operand 0, single buffered']
    %22 = vsyncpa [#allocation3], 0
    %23 = vsyncpa [#allocation6], 0
    %24 = vsyncpa [#allocation4], 0
    // Predicated region
    $region2: #{tpu_custom_call.1} parent=1 // pred_check
      _
    $region3: #{tpu_custom_call.1} parent=1 // pred_check_branch
      %26 = sbr.rel (0) target = $region5
    $region4: #{tpu_custom_call.1} parent=1 // pred_region
      _
    $region5: #{tpu_custom_call.1} parent=1 // pred_fallthru
      _
    // Predicated region
    $region6: #{tpu_custom_call.1} parent=1 // pred_check
      _
    $region7: #{tpu_custom_call.1} parent=1 // pred_check_branch
      %28 = sbr.rel (0) target = $region9
    $region8: #{tpu_custom_call.1} parent=1 // pred_region
      %s30 = ssub.s32 16, 16
      %31 = vsyncadd [#allocation3], %s30
      %s33 = sshll.u32 [#allocation2], 4
      %s34 = int_to_ptr.vmem [resolvable:$true] %s33
      %36 = dma.hbm_to_vmem [thread:$0]  %s1, 16, %s34, [#allocation3]
    $region9: #{tpu_custom_call.1} parent=1 // pred_fallthru
      _
    // Predicated region
    $region10: #{tpu_custom_call.1} parent=1 // pred_check
      _
    $region11: #{tpu_custom_call.1} parent=1 // pred_check_branch
      %38 = sbr.rel (0) target = $region13
    $region12: #{tpu_custom_call.1} parent=1 // pred_region
      _
    $region13: #{tpu_custom_call.1} parent=1 // pred_fallthru
      _
    // Predicated region
    $region14: #{tpu_custom_call.1} parent=1 // pred_check
      _
    $region15: #{tpu_custom_call.1} parent=1 // pred_check_branch
      %40 = sbr.rel (0) target = $region17
    $region16: #{tpu_custom_call.1} parent=1 // pred_region
      _
    $region17: #{tpu_custom_call.1} parent=1 // pred_fallthru
      _
    // Predicated region
    $region18: #{tpu_custom_call.1} parent=1 // pred_check
      _
    $region19: #{tpu_custom_call.1} parent=1 // pred_check_branch
      %42 = sbr.rel (0) target = $region21
    $region20: #{tpu_custom_call.1} parent=1 // pred_region
      %s44 = ssub.s32 16, 16
      %45 = vsyncadd [#allocation6], %s44
      %s47 = sshll.u32 [#allocation5], 4
      %s48 = int_to_ptr.vmem [resolvable:$true] %s47
      %50 = dma.hbm_to_vmem [thread:$0]  %s4, 16, %s48, [#allocation6]
    $region21: #{tpu_custom_call.1} parent=1 // pred_fallthru
      _
    // Predicated region
    $region22: #{tpu_custom_call.1} parent=1 // pred_check
      _
    $region23: #{tpu_custom_call.1} parent=1 // pred_check_branch
      %52 = sbr.rel (0) target = $region25
    $region24: #{tpu_custom_call.1} parent=1 // pred_region
      %s54 = ssub.s32 32, 32
      %55 = vsyncadd [#allocation6], %s54
      %s57 = sshll.u32 [#allocation7], 4
      %s58 = int_to_ptr.vmem [resolvable:$true] %s57
      %60 = dma.hbm_to_vmem [thread:$0]  %s5, 32, %s58, [#allocation6]
    $region25: #{tpu_custom_call.1} parent=1 // pred_fallthru
      _
    // Predicated region
    $region26: #{tpu_custom_call.1} parent=1 // pred_check
      _
    $region27: #{tpu_custom_call.1} parent=1 // pred_check_branch
      %62 = sbr.rel (0) target = $region29
    $region28: #{tpu_custom_call.1} parent=1 // pred_region
      _
    $region29: #{tpu_custom_call.1} parent=1 // pred_fallthru
      _
    // Predicated region
    $region30: #{tpu_custom_call.1} parent=1 // pred_check
      _
    $region31: #{tpu_custom_call.1} parent=1 // pred_check_branch
      %64 = sbr.rel (0) target = $region33
    $region32: #{tpu_custom_call.1} parent=1 // pred_region
      _
    $region33: #{tpu_custom_call.1} parent=1 // pred_fallthru
      _
    // Predicated region
    $region34: #{tpu_custom_call.1} parent=1 // pred_check
      _
    $region35: #{tpu_custom_call.1} parent=1 // pred_check_branch
      %66 = sbr.rel (0) target = $region37
    $region36: #{tpu_custom_call.1} parent=1 // pred_region
      _
    $region37: #{tpu_custom_call.1} parent=1 // pred_fallthru
      _
    // Predicated region
    $region38: #{tpu_custom_call.1} parent=1 // pred_check
      _
    $region39: #{tpu_custom_call.1} parent=1 // pred_check_branch
      %68 = sbr.rel (0) target = $region41
    $region40: #{tpu_custom_call.1} parent=1 // pred_region
      _
    $region41: #{tpu_custom_call.1} parent=1 // pred_fallthru
      _
    // Predicated region
    $region42: #{tpu_custom_call.1} parent=1 // pred_check
      _
    $region43: #{tpu_custom_call.1} parent=1 // pred_check_branch
      %70 = sbr.rel (0) target = $region45
    $region44: #{tpu_custom_call.1} parent=1 // pred_region
      _
    $region45: #{tpu_custom_call.1} parent=1 // pred_fallthru
      _
    // Predicated region
    $region46: #{tpu_custom_call.1} parent=1 // pred_check
      _
    $region47: #{tpu_custom_call.1} parent=1 // pred_check_branch
      %72 = sbr.rel (0) target = $region49
    $region48: #{tpu_custom_call.1} parent=1 // pred_region
      _
    $region49: #{tpu_custom_call.1} parent=1 // pred_fallthru
      _
    // Predicated region
    $region50: #{tpu_custom_call.1} parent=1 // pred_check
      _
    $region51: #{tpu_custom_call.1} parent=1 // pred_check_branch
      %74 = sbr.rel (0) target = $region53
    $region52: #{tpu_custom_call.1} parent=1 // pred_region
      _
    $region53: #{tpu_custom_call.1} parent=1 // pred_fallthru
      _
    // Predicated region
    $region54: #{tpu_custom_call.1} parent=1 // pred_check
      _
    $region55: #{tpu_custom_call.1} parent=1 // pred_check_branch
      %76 = sbr.rel (0) target = $region57
    $region56: #{tpu_custom_call.1} parent=1 // pred_region
      _
    $region57: #{tpu_custom_call.1} parent=1 // pred_fallthru
      _
    // Predicated region
    $region58: #{tpu_custom_call.1} parent=1 // pred_check
      _
    $region59: #{tpu_custom_call.1} parent=1 // pred_check_branch
      %78 = sbr.rel (0) target = $region61
    $region60: #{tpu_custom_call.1} parent=1 // pred_region
      _
    $region61: #{tpu_custom_call.1} parent=1 // pred_fallthru
      _
    // Predicated region
    $region62: #{tpu_custom_call.1} parent=1 // pred_check
      _
    $region63: #{tpu_custom_call.1} parent=1 // pred_check_branch
      %80 = sbr.rel (0) target = $region65
    $region64: #{tpu_custom_call.1} parent=1 // pred_region
      _
    $region65: #{tpu_custom_call.1} parent=1 // pred_fallthru
      _
    // Predicated region
    $region66: #{tpu_custom_call.1} parent=1 // pred_check
      _
    $region67: #{tpu_custom_call.1} parent=1 // pred_check_branch
      %82 = sbr.rel (0) target = $region69
    $region68: #{tpu_custom_call.1} parent=1 // pred_region
      _
    $region69: #{tpu_custom_call.1} parent=1 // pred_fallthru
      _
    // Predicated region
    $region70: #{tpu_custom_call.1} parent=1 // pred_check
      _
    $region71: #{tpu_custom_call.1} parent=1 // pred_check_branch
      %84 = sbr.rel (0) target = $region73
    $region72: #{tpu_custom_call.1} parent=1 // pred_region
      %85 = dma.done [#allocation3], 16
    $region73: #{tpu_custom_call.1} parent=1 // pred_fallthru
      _
    // Predicated region
    $region74: #{tpu_custom_call.1} parent=1 // pred_check
      _
    $region75: #{tpu_custom_call.1} parent=1 // pred_check_branch
      %87 = sbr.rel (0) target = $region77
    $region76: #{tpu_custom_call.1} parent=1 // pred_region
      %88 = dma.done [#allocation6], 16
    $region77: #{tpu_custom_call.1} parent=1 // pred_fallthru
      _
    // Predicated region
    $region78: #{tpu_custom_call.1} parent=1 // pred_check
      _
    $region79: #{tpu_custom_call.1} parent=1 // pred_check_branch
      %90 = sbr.rel (0) target = $region81
    $region80: #{tpu_custom_call.1} parent=1 // pred_region
      %91 = dma.done [#allocation6], 32
    $region81: #{tpu_custom_call.1} parent=1 // pred_fallthru
      _
    %v92 = vld [vmem:[%s0] sm:$0xff]
    %v93 = vld [vmem:[%s0 + $0x8] sm:$0xff]
    %v94 = vld [vmem:[%s0 + $0x10] sm:$0xff]
    %v95 = vld [vmem:[%s0 + $0x18] sm:$0xff]
    %v96 = vld [vmem:[%s0 + $0x20] sm:$0xff]
    %v97 = vld [vmem:[%s0 + $0x28] sm:$0xff]
    %v98 = vld [vmem:[%s0 + $0x30] sm:$0xff]
    %v99 = vld [vmem:[%s0 + $0x38] sm:$0xff]
    %v100 = vld [vmem:[%s0 + $0x40] sm:$0xff]
    %v101 = vld [vmem:[%s0 + $0x48] sm:$0xff]
    %v102 = vld [vmem:[%s0 + $0x50] sm:$0xff]
    %v103 = vld [vmem:[%s0 + $0x58] sm:$0xff]
    %v104 = vld [vmem:[%s0 + $0x60] sm:$0xff]
    %v105 = vld [vmem:[%s0 + $0x68] sm:$0xff]
    %v106 = vld [vmem:[%s0 + $0x70] sm:$0xff]
    %v107 = vld [vmem:[%s0 + $0x78] sm:$0xff]
    %vm108 = vcmask 130048
    %109 = vst.msk [vmem:[#allocation8] sm:$0xff] %vm108, %v92
    %110 = vst.msk [vmem:[#allocation8 + $0x8] sm:$0xff] %vm108, %v93
    %111 = vst.msk [vmem:[#allocation8 + $0x10] sm:$0xff] %vm108, %v94
    %112 = vst.msk [vmem:[#allocation8 + $0x18] sm:$0xff] %vm108, %v95
    %113 = vst.msk [vmem:[#allocation8 + $0x20] sm:$0xff] %vm108, %v96
    %114 = vst.msk [vmem:[#allocation8 + $0x28] sm:$0xff] %vm108, %v97
    %115 = vst.msk [vmem:[#allocation8 + $0x30] sm:$0xff] %vm108, %v98
    %116 = vst.msk [vmem:[#allocation8 + $0x38] sm:$0xff] %vm108, %v99
    %117 = vst.msk [vmem:[#allocation8 + $0x80] sm:$0xff] %vm108, %v100
    %118 = vst.msk [vmem:[#allocation8 + $0x88] sm:$0xff] %vm108, %v101
    %119 = vst.msk [vmem:[#allocation8 + $0x90] sm:$0xff] %vm108, %v102
    %120 = vst.msk [vmem:[#allocation8 + $0x98] sm:$0xff] %vm108, %v103
    %121 = vst.msk [vmem:[#allocation8 + $0xa0] sm:$0xff] %vm108, %v104
    %122 = vst.msk [vmem:[#allocation8 + $0xa8] sm:$0xff] %vm108, %v105
    %123 = vst.msk [vmem:[#allocation8 + $0xb0] sm:$0xff] %vm108, %v106
    %124 = vst.msk [vmem:[#allocation8 + $0xb8] sm:$0xff] %vm108, %v107
    %v125 = vld [vmem:[#allocation2] sm:$0x1]
    %v126 = vld [vmem:[%s2] sm:$0xff]
    %v127 = vld [vmem:[%s2 + $0x8] sm:$0xff]
    %v128 = vld [vmem:[%s3] sm:$0xff]
    %v129 = vld [vmem:[%s3 + $0x8] sm:$0xff]
    %v130 = vld [vmem:[#allocation5] sm:$0x1]
    %v132 = vsel %vm108, %v92, 0
    %v135 = vsel %vm108, %v93, 0
    %v138 = vsel %vm108, %v94, 0
    %v141 = vsel %vm108, %v95, 0
    %v144 = vsel %vm108, %v96, 0
    %v147 = vsel %vm108, %v97, 0
    %v150 = vsel %vm108, %v98, 0
    %v153 = vsel %vm108, %v99, 0
    %v156 = vsel %vm108, %v100, 0
    %v159 = vsel %vm108, %v101, 0
    %v162 = vsel %vm108, %v102, 0
    %v165 = vsel %vm108, %v103, 0
    %v168 = vsel %vm108, %v104, 0
    %v171 = vsel %vm108, %v105, 0
    %v174 = vsel %vm108, %v106, 0
    %v177 = vsel %vm108, %v107, 0
    %179 = vmatprep.subr.mxu0 0.0
    %180 = vmatpush1.msra.mxu0 %v126
    %181 = vmatprep.subr.mxu0 0.0
    %182 = vmatpush1.msra.mxu0 %v127
    %183 = vmatprep.subr.mxu0 0.0
    %184 = vmatpush1.msra.mxu0 0.0
    %185 = vmatprep.subr.mxu0 0.0
    %186 = vmatpush1.msra.mxu0 0.0
    %187 = vmatprep.subr.mxu0 0.0
    %188 = vmatpush1.msra.mxu0 0.0
    %189 = vmatprep.subr.mxu0 0.0
    %190 = vmatpush1.msra.mxu0 0.0
    %191 = vmatprep.subr.mxu0 0.0
    %192 = vmatpush1.msra.mxu0 0.0
    %193 = vmatprep.subr.mxu0 0.0
    %194 = vmatpush1.msra.mxu0 0.0
    %195 = vmatprep.subr.mxu0 0.0
    %196 = vmatpush1.msra.mxu0 0.0
    %197 = vmatprep.subr.mxu0 0.0
    %198 = vmatpush1.msra.mxu0 0.0
    %199 = vmatprep.subr.mxu0 0.0
    %200 = vmatpush1.msra.mxu0 0.0
    %201 = vmatprep.subr.mxu0 0.0
    %202 = vmatpush1.msra.mxu0 0.0
    %203 = vmatprep.subr.mxu0 0.0
    %204 = vmatpush1.msra.mxu0 0.0
    %205 = vmatprep.subr.mxu0 0.0
    %206 = vmatpush1.msra.mxu0 0.0
    %207 = vmatprep.subr.mxu0 0.0
    %208 = vmatpush1.msra.mxu0 0.0
    %209 = vmatprep.subr.mxu0 0.0
    %210 = vmatpush1.msra.mxu0 0.0
    %211 = vmatprep.subr.mxu0 0.0
    %212 = vmatpush1.msra.mxu0 0.0
    %213 = vmatprep.subr.mxu0 0.0
    %214 = vmatpush1.msra.mxu0 0.0
    %215 = vmatprep.subr.mxu0 0.0
    %216 = vmatpush1.msra.mxu0 0.0
    %217 = vmatprep.subr.mxu0 0.0
    %218 = vmatpush1.msra.mxu0 0.0
    %219 = vmatprep.subr.mxu0 0.0
    %220 = vmatpush1.msra.mxu0 0.0
    %221 = vmatprep.subr.mxu0 0.0
    %222 = vmatpush1.msra.mxu0 0.0
    %223 = vmatprep.subr.mxu0 0.0
    %224 = vmatpush1.msra.mxu0 0.0
    %225 = vmatprep.subr.mxu0 0.0
    %226 = vmatpush1.msra.mxu0 0.0
    %227 = vmatprep.subr.mxu0 0.0
    %228 = vmatpush1.msra.mxu0 0.0
    %229 = vmatprep.subr.mxu0 0.0
    %230 = vmatpush1.msra.mxu0 0.0
    %231 = vmatprep.subr.mxu0 0.0
    %232 = vmatpush1.msra.mxu0 0.0
    %233 = vmatprep.subr.mxu0 0.0
    %234 = vmatpush1.msra.mxu0 0.0
    %235 = vmatprep.subr.mxu0 0.0
    %236 = vmatpush1.msra.mxu0 0.0
    %237 = vmatprep.subr.mxu0 0.0
    %238 = vmatpush1.msra.mxu0 0.0
    %239 = vmatprep.subr.mxu0 0.0
    %240 = vmatpush1.msra.mxu0 0.0
    %241 = vmatprep.subr.mxu0 0.0
    %242 = vmatpush1.msra.mxu0 0.0
    %243 = vmatprep.mubr.f32.mxu0 0.0
    %244 = vmatmul.mubr.f32.gmra.mrb[0].mxu0 %v132
    %v245 = vpop.f32.mrb[0].mxu0
    %v246 = vadd.f32 0.0, %v245
    %v247 = vpop.f32.mrb[0].mxu0
    %248 = vmatprep.mubr.f32.mxu0 0.0
    %249 = vmatmul.mubr.f32.gmra.mrb[0].mxu0 %v135
    %v250 = vpop.f32.mrb[0].mxu0
    %v251 = vadd.f32 0.0, %v250
    %v252 = vpop.f32.mrb[0].mxu0
    %253 = vmatprep.mubr.f32.mxu0 0.0
    %254 = vmatmul.mubr.f32.gmra.mrb[0].mxu0 %v138
    %v255 = vpop.f32.mrb[0].mxu0
    %v256 = vadd.f32 0.0, %v255
    %v257 = vpop.f32.mrb[0].mxu0
    %258 = vmatprep.mubr.f32.mxu0 0.0
    %259 = vmatmul.mubr.f32.gmra.mrb[0].mxu0 %v141
    %v260 = vpop.f32.mrb[0].mxu0
    %v261 = vadd.f32 0.0, %v260
    %v262 = vpop.f32.mrb[0].mxu0
    %263 = vmatprep.mubr.f32.mxu0 0.0
    %264 = vmatmul.mubr.f32.gmra.mrb[0].mxu0 %v144
    %v265 = vpop.f32.mrb[0].mxu0
    %v266 = vadd.f32 0.0, %v265
    %v267 = vpop.f32.mrb[0].mxu0
    %268 = vmatprep.mubr.f32.mxu0 0.0
    %269 = vmatmul.mubr.f32.gmra.mrb[0].mxu0 %v147
    %v270 = vpop.f32.mrb[0].mxu0
    %v271 = vadd.f32 0.0, %v270
    %v272 = vpop.f32.mrb[0].mxu0
    %273 = vmatprep.mubr.f32.mxu0 0.0
    %274 = vmatmul.mubr.f32.gmra.mrb[0].mxu0 %v150
    %v275 = vpop.f32.mrb[0].mxu0
    %v276 = vadd.f32 0.0, %v275
    %v277 = vpop.f32.mrb[0].mxu0
    %278 = vmatprep.mubr.f32.mxu0 0.0
    %279 = vmatmul.mubr.f32.gmra.mrb[0].mxu0 %v153
    %v280 = vpop.f32.mrb[0].mxu0
    %v281 = vadd.f32 0.0, %v280
    %v282 = vpop.f32.mrb[0].mxu0
    %283 = vmatprep.mubr.f32.mxu0 0.0
    %284 = vmatmul.mubr.f32.gmra.mrb[0].mxu0 %v156
    %v285 = vpop.f32.mrb[0].mxu0
    %v286 = vadd.f32 0.0, %v285
    %v287 = vpop.f32.mrb[0].mxu0
    %288 = vmatprep.mubr.f32.mxu0 0.0
    %289 = vmatmul.mubr.f32.gmra.mrb[0].mxu0 %v159
    %v290 = vpop.f32.mrb[0].mxu0
    %v291 = vadd.f32 0.0, %v290
    %v292 = vpop.f32.mrb[0].mxu0
    %293 = vmatprep.mubr.f32.mxu0 0.0
    %294 = vmatmul.mubr.f32.gmra.mrb[0].mxu0 %v162
    %v295 = vpop.f32.mrb[0].mxu0
    %v296 = vadd.f32 0.0, %v295
    %v297 = vpop.f32.mrb[0].mxu0
    %298 = vmatprep.mubr.f32.mxu0 0.0
    %299 = vmatmul.mubr.f32.gmra.mrb[0].mxu0 %v165
    %v300 = vpop.f32.mrb[0].mxu0
    %v301 = vadd.f32 0.0, %v300
    %v302 = vpop.f32.mrb[0].mxu0
    %303 = vmatprep.mubr.f32.mxu0 0.0
    %304 = vmatmul.mubr.f32.gmra.mrb[0].mxu0 %v168
    %v305 = vpop.f32.mrb[0].mxu0
    %v306 = vadd.f32 0.0, %v305
    %v307 = vpop.f32.mrb[0].mxu0
    %308 = vmatprep.mubr.f32.mxu0 0.0
    %309 = vmatmul.mubr.f32.gmra.mrb[0].mxu0 %v171
    %v310 = vpop.f32.mrb[0].mxu0
    %v311 = vadd.f32 0.0, %v310
    %v312 = vpop.f32.mrb[0].mxu0
    %313 = vmatprep.mubr.f32.mxu0 0.0
    %314 = vmatmul.mubr.f32.gmra.mrb[0].mxu0 %v174
    %v315 = vpop.f32.mrb[0].mxu0
    %v316 = vadd.f32 0.0, %v315
    %v317 = vpop.f32.mrb[0].mxu0
    %318 = vmatprep.mubr.f32.mxu0 0.0
    %319 = vmatmul.mubr.f32.gmra.mrb[0].mxu0 %v177
    %v320 = vpop.f32.mrb[0].mxu0
    %v321 = vadd.f32 0.0, %v320
    %v322 = vpop.f32.mrb[0].mxu0
    %323 = vdwg.mxu0
    %vm324 = vcmask 523264
    %v326 = vsel %vm324, %v125, 0
    %328 = vmatprep.subr.mxu0 0.0
    %329 = vmatpush1.msra.mxu0 %v246
    %330 = vmatprep.subr.mxu0 0.0
    %331 = vmatpush1.msra.mxu0 %v251
    %332 = vmatprep.subr.mxu0 0.0
    %333 = vmatpush1.msra.mxu0 %v256
    %334 = vmatprep.subr.mxu0 0.0
    %335 = vmatpush1.msra.mxu0 %v261
    %336 = vmatprep.subr.mxu0 0.0
    %337 = vmatpush1.msra.mxu0 %v266
    %338 = vmatprep.subr.mxu0 0.0
    %339 = vmatpush1.msra.mxu0 %v271
    %340 = vmatprep.subr.mxu0 0.0
    %341 = vmatpush1.msra.mxu0 %v276
    %342 = vmatprep.subr.mxu0 0.0
    %343 = vmatpush1.msra.mxu0 %v281
    %344 = vmatprep.subr.mxu0 0.0
    %345 = vmatpush1.msra.mxu0 0.0
    %346 = vmatprep.subr.mxu0 0.0
    %347 = vmatpush1.msra.mxu0 0.0
    %348 = vmatprep.subr.mxu0 0.0
    %349 = vmatpush1.msra.mxu0 0.0
    %350 = vmatprep.subr.mxu0 0.0
    %351 = vmatpush1.msra.mxu0 0.0
    %352 = vmatprep.subr.mxu0 0.0
    %353 = vmatpush1.msra.mxu0 0.0
    %354 = vmatprep.subr.mxu0 0.0
    %355 = vmatpush1.msra.mxu0 0.0
    %356 = vmatprep.subr.mxu0 0.0
    %357 = vmatpush1.msra.mxu0 0.0
    %358 = vmatprep.subr.mxu0 0.0
    %359 = vmatpush1.msra.mxu0 0.0
    %360 = vmatprep.subr.mxu0 0.0
    %361 = vmatpush1.msra.mxu0 0.0
    %362 = vmatprep.subr.mxu0 0.0
    %363 = vmatpush1.msra.mxu0 0.0
    %364 = vmatprep.subr.mxu0 0.0
    %365 = vmatpush1.msra.mxu0 0.0
    %366 = vmatprep.subr.mxu0 0.0
    %367 = vmatpush1.msra.mxu0 0.0
    %368 = vmatprep.subr.mxu0 0.0
    %369 = vmatpush1.msra.mxu0 0.0
    %370 = vmatprep.subr.mxu0 0.0
    %371 = vmatpush1.msra.mxu0 0.0
    %372 = vmatprep.subr.mxu0 0.0
    %373 = vmatpush1.msra.mxu0 0.0
    %374 = vmatprep.subr.mxu0 0.0
    %375 = vmatpush1.msra.mxu0 0.0
    %376 = vmatprep.subr.mxu0 0.0
    %377 = vmatpush1.msra.mxu0 0.0
    %378 = vmatprep.subr.mxu0 0.0
    %379 = vmatpush1.msra.mxu0 0.0
    %380 = vmatprep.subr.mxu0 0.0
    %381 = vmatpush1.msra.mxu0 0.0
    %382 = vmatprep.subr.mxu0 0.0
    %383 = vmatpush1.msra.mxu0 0.0
    %384 = vmatprep.subr.mxu0 0.0
    %385 = vmatpush1.msra.mxu0 0.0
    %386 = vmatprep.subr.mxu0 0.0
    %387 = vmatpush1.msra.mxu0 0.0
    %388 = vmatprep.subr.mxu0 0.0
    %389 = vmatpush1.msra.mxu0 0.0
    %390 = vmatprep.subr.mxu0 0.0
    %391 = vmatpush1.msra.mxu0 0.0
    %392 = vmatprep.mubr.f32.mxu0 0.0
    %393 = vmatmul.mubr.f32.gmra.mrb[0].mxu0 %v326
    %v394 = vpop.f32.mrb[0].mxu0
    %v395 = vadd.f32 0.0, %v394
    %v396 = vpop.f32.mrb[0].mxu0
    %397 = vdwg.mxu0
    %398 = vmatprep.subr.mxu0 0.0
    %399 = vmatpush1.msra.mxu0 %v286
    %400 = vmatprep.subr.mxu0 0.0
    %401 = vmatpush1.msra.mxu0 %v291
    %402 = vmatprep.subr.mxu0 0.0
    %403 = vmatpush1.msra.mxu0 %v296
    %404 = vmatprep.subr.mxu0 0.0
    %405 = vmatpush1.msra.mxu0 %v301
    %406 = vmatprep.subr.mxu0 0.0
    %407 = vmatpush1.msra.mxu0 %v306
    %408 = vmatprep.subr.mxu0 0.0
    %409 = vmatpush1.msra.mxu0 %v311
    %410 = vmatprep.subr.mxu0 0.0
    %411 = vmatpush1.msra.mxu0 %v316
    %412 = vmatprep.subr.mxu0 0.0
    %413 = vmatpush1.msra.mxu0 %v321
    %414 = vmatprep.subr.mxu0 0.0
    %415 = vmatpush1.msra.mxu0 0.0
    %416 = vmatprep.subr.mxu0 0.0
    %417 = vmatpush1.msra.mxu0 0.0
    %418 = vmatprep.subr.mxu0 0.0
    %419 = vmatpush1.msra.mxu0 0.0
    %420 = vmatprep.subr.mxu0 0.0
    %421 = vmatpush1.msra.mxu0 0.0
    %422 = vmatprep.subr.mxu0 0.0
    %423 = vmatpush1.msra.mxu0 0.0
    %424 = vmatprep.subr.mxu0 0.0
    %425 = vmatpush1.msra.mxu0 0.0
    %426 = vmatprep.subr.mxu0 0.0
    %427 = vmatpush1.msra.mxu0 0.0
    %428 = vmatprep.subr.mxu0 0.0
    %429 = vmatpush1.msra.mxu0 0.0
    %430 = vmatprep.subr.mxu0 0.0
    %431 = vmatpush1.msra.mxu0 0.0
    %432 = vmatprep.subr.mxu0 0.0
    %433 = vmatpush1.msra.mxu0 0.0
    %434 = vmatprep.subr.mxu0 0.0
    %435 = vmatpush1.msra.mxu0 0.0
    %436 = vmatprep.subr.mxu0 0.0
    %437 = vmatpush1.msra.mxu0 0.0
    %438 = vmatprep.subr.mxu0 0.0
    %439 = vmatpush1.msra.mxu0 0.0
    %440 = vmatprep.subr.mxu0 0.0
    %441 = vmatpush1.msra.mxu0 0.0
    %442 = vmatprep.subr.mxu0 0.0
    %443 = vmatpush1.msra.mxu0 0.0
    %444 = vmatprep.subr.mxu0 0.0
    %445 = vmatpush1.msra.mxu0 0.0
    %446 = vmatprep.subr.mxu0 0.0
    %447 = vmatpush1.msra.mxu0 0.0
    %448 = vmatprep.subr.mxu0 0.0
    %449 = vmatpush1.msra.mxu0 0.0
    %450 = vmatprep.subr.mxu0 0.0
    %451 = vmatpush1.msra.mxu0 0.0
    %452 = vmatprep.subr.mxu0 0.0
    %453 = vmatpush1.msra.mxu0 0.0
    %454 = vmatprep.subr.mxu0 0.0
    %455 = vmatpush1.msra.mxu0 0.0
    %456 = vmatprep.subr.mxu0 0.0
    %457 = vmatpush1.msra.mxu0 0.0
    %458 = vmatprep.subr.mxu0 0.0
    %459 = vmatpush1.msra.mxu0 0.0
    %460 = vmatprep.subr.mxu0 0.0
    %461 = vmatpush1.msra.mxu0 0.0
    %462 = vmatprep.mubr.f32.mxu0 0.0
    %463 = vmatmul.mubr.f32.gmra.mrb[0].mxu0 %v326
    %v464 = vpop.f32.mrb[0].mxu0
    %v465 = vadd.f32 0.0, %v464
    %v466 = vpop.f32.mrb[0].mxu0
    %467 = vdwg.mxu0
    %vm468 = vcmp.ge.f32.partialorder %v395, 0.0
    %vm469 = vcmp.ge.f32.partialorder %v465, 0.0
    %v470 = vmul.f32 %v395, 0.2
    %v471 = vmul.f32 %v465, 0.2
    %v472 = vsel %vm468, %v395, %v470
    %v473 = vsel %vm469, %v465, %v471
    %v476 = vrot.slane %v473, 7
    %vm477 = vcmask 1041409
    %v478 = vsel %vm477, %v476, %v472
    %vm479 = vcmask 7168
    %v480 = vsel %vm479, %v478, 0
    %vm482 = vcmask 1040384
    %v484 = vsel %vm482, %v130, 0
    %486 = vmatprep.subr.mxu0 0.0
    %487 = vmatpush1.msra.mxu0 %v484
    %488 = vmatprep.subr.mxu0 0.0
    %489 = vmatpush1.msra.mxu0 0.0
    %490 = vmatprep.subr.mxu0 0.0
    %491 = vmatpush1.msra.mxu0 0.0
    %492 = vmatprep.subr.mxu0 0.0
    %493 = vmatpush1.msra.mxu0 0.0
    %494 = vmatprep.subr.mxu0 0.0
    %495 = vmatpush1.msra.mxu0 0.0
    %496 = vmatprep.subr.mxu0 0.0
    %497 = vmatpush1.msra.mxu0 0.0
    %498 = vmatprep.subr.mxu0 0.0
    %499 = vmatpush1.msra.mxu0 0.0
    %500 = vmatprep.subr.mxu0 0.0
    %501 = vmatpush1.msra.mxu0 0.0
    %502 = vmatprep.subr.mxu0 0.0
    %503 = vmatpush1.msra.mxu0 0.0
    %504 = vmatprep.subr.mxu0 0.0
    %505 = vmatpush1.msra.mxu0 0.0
    %506 = vmatprep.subr.mxu0 0.0
    %507 = vmatpush1.msra.mxu0 0.0
    %508 = vmatprep.subr.mxu0 0.0
    %509 = vmatpush1.msra.mxu0 0.0
    %510 = vmatprep.subr.mxu0 0.0
    %511 = vmatpush1.msra.mxu0 0.0
    %512 = vmatprep.subr.mxu0 0.0
    %513 = vmatpush1.msra.mxu0 0.0
    %514 = vmatprep.subr.mxu0 0.0
    %515 = vmatpush1.msra.mxu0 0.0
    %516 = vmatprep.subr.mxu0 0.0
    %517 = vmatpush1.msra.mxu0 0.0
    %518 = vmatprep.subr.mxu0 0.0
    %519 = vmatpush1.msra.mxu0 0.0
    %520 = vmatprep.subr.mxu0 0.0
    %521 = vmatpush1.msra.mxu0 0.0
    %522 = vmatprep.subr.mxu0 0.0
    %523 = vmatpush1.msra.mxu0 0.0
    %524 = vmatprep.subr.mxu0 0.0
    %525 = vmatpush1.msra.mxu0 0.0
    %526 = vmatprep.subr.mxu0 0.0
    %527 = vmatpush1.msra.mxu0 0.0
    %528 = vmatprep.subr.mxu0 0.0
    %529 = vmatpush1.msra.mxu0 0.0
    %530 = vmatprep.subr.mxu0 0.0
    %531 = vmatpush1.msra.mxu0 0.0
    %532 = vmatprep.subr.mxu0 0.0
    %533 = vmatpush1.msra.mxu0 0.0
    %534 = vmatprep.subr.mxu0 0.0
    %535 = vmatpush1.msra.mxu0 0.0
    %536 = vmatprep.subr.mxu0 0.0
    %537 = vmatpush1.msra.mxu0 0.0
    %538 = vmatprep.subr.mxu0 0.0
    %539 = vmatpush1.msra.mxu0 0.0
    %540 = vmatprep.subr.mxu0 0.0
    %541 = vmatpush1.msra.mxu0 0.0
    %542 = vmatprep.subr.mxu0 0.0
    %543 = vmatpush1.msra.mxu0 0.0
    %544 = vmatprep.subr.mxu0 0.0
    %545 = vmatpush1.msra.mxu0 0.0
    %546 = vmatprep.subr.mxu0 0.0
    %547 = vmatpush1.msra.mxu0 0.0
    %548 = vmatprep.subr.mxu0 0.0
    %549 = vmatpush1.msra.mxu0 0.0
    %550 = vmatprep.mubr.f32.mxu0 0.0
    %551 = vmatmul.mubr.f32.gmra.mrb[0].mxu0 %v480
    %v552 = vpop.f32.mrb[0].mxu0
    %v553 = vadd.f32 0.0, %v552
    %v554 = vpop.f32.mrb[0].mxu0
    %555 = vdwg.mxu0
    %v558 = vunpack.c.l.s4 1966171168
    %v559 = vunpack.c.0.s8 %v558
    %v560 = vlaneseq
    %v561 = vshrl.u32 %v560, 7
    %v562 = vsub.s32 %v559, %v561
    %v563 = vrot.slane %v553, %v562
    %v564 = vcombine.high %v563, %v563
    %v566 = vunpack.c.l.s4 1966171168
    %v567 = vunpack.c.0.s8 %v566
    %v568 = vlaneseq
    %v569 = vshrl.u32 %v568, 7
    %v570 = vsub.s32 %v567, %v569
    %v571 = vrot.slane %v563, %v570
    %v573 = vunpack.c.l.s4 1966171168
    %v574 = vunpack.c.0.s8 %v573
    %v575 = vlaneseq
    %v576 = vshrl.u32 %v575, 7
    %v577 = vsub.s32 %v574, %v576
    %v578 = vrot.slane %v564, %v577
    %v580 = vsel %vm479, %v128, 0
    %v583 = vsel %vm479, %v129, 0
    %v585 = vsel %vm482, %v571, 0
    %587 = vmatprep.subr.mxu0 0.0
    %588 = vmatpush1.msra.mxu0 %v585
    %589 = vmatprep.subr.mxu0 0.0
    %590 = vmatpush1.msra.mxu0 0.0
    %591 = vmatprep.subr.mxu0 0.0
    %592 = vmatpush1.msra.mxu0 0.0
    %593 = vmatprep.subr.mxu0 0.0
    %594 = vmatpush1.msra.mxu0 0.0
    %595 = vmatprep.subr.mxu0 0.0
    %596 = vmatpush1.msra.mxu0 0.0
    %597 = vmatprep.subr.mxu0 0.0
    %598 = vmatpush1.msra.mxu0 0.0
    %599 = vmatprep.subr.mxu0 0.0
    %600 = vmatpush1.msra.mxu0 0.0
    %601 = vmatprep.subr.mxu0 0.0
    %602 = vmatpush1.msra.mxu0 0.0
    %603 = vmatprep.subr.mxu0 0.0
    %604 = vmatpush1.msra.mxu0 0.0
    %605 = vmatprep.subr.mxu0 0.0
    %606 = vmatpush1.msra.mxu0 0.0
    %607 = vmatprep.subr.mxu0 0.0
    %608 = vmatpush1.msra.mxu0 0.0
    %609 = vmatprep.subr.mxu0 0.0
    %610 = vmatpush1.msra.mxu0 0.0
    %611 = vmatprep.subr.mxu0 0.0
    %612 = vmatpush1.msra.mxu0 0.0
    %613 = vmatprep.subr.mxu0 0.0
    %614 = vmatpush1.msra.mxu0 0.0
    %615 = vmatprep.subr.mxu0 0.0
    %616 = vmatpush1.msra.mxu0 0.0
    %617 = vmatprep.subr.mxu0 0.0
    %618 = vmatpush1.msra.mxu0 0.0
    %619 = vmatprep.subr.mxu0 0.0
    %620 = vmatpush1.msra.mxu0 0.0
    %621 = vmatprep.subr.mxu0 0.0
    %622 = vmatpush1.msra.mxu0 0.0
    %623 = vmatprep.subr.mxu0 0.0
    %624 = vmatpush1.msra.mxu0 0.0
    %625 = vmatprep.subr.mxu0 0.0
    %626 = vmatpush1.msra.mxu0 0.0
    %627 = vmatprep.subr.mxu0 0.0
    %628 = vmatpush1.msra.mxu0 0.0
    %629 = vmatprep.subr.mxu0 0.0
    %630 = vmatpush1.msra.mxu0 0.0
    %631 = vmatprep.subr.mxu0 0.0
    %632 = vmatpush1.msra.mxu0 0.0
    %633 = vmatprep.subr.mxu0 0.0
    %634 = vmatpush1.msra.mxu0 0.0
    %635 = vmatprep.subr.mxu0 0.0
    %636 = vmatpush1.msra.mxu0 0.0
    %637 = vmatprep.subr.mxu0 0.0
    %638 = vmatpush1.msra.mxu0 0.0
    %639 = vmatprep.subr.mxu0 0.0
    %640 = vmatpush1.msra.mxu0 0.0
    %641 = vmatprep.subr.mxu0 0.0
    %642 = vmatpush1.msra.mxu0 0.0
    %643 = vmatprep.subr.mxu0 0.0
    %644 = vmatpush1.msra.mxu0 0.0
    %645 = vmatprep.subr.mxu0 0.0
    %646 = vmatpush1.msra.mxu0 0.0
    %647 = vmatprep.subr.mxu0 0.0
    %648 = vmatpush1.msra.mxu0 0.0
    %649 = vmatprep.subr.mxu0 0.0
    %650 = vmatpush1.msra.mxu0 0.0
    %651 = vmatprep.mubr.f32.mxu0 0.0
    %652 = vmatmul.mubr.f32.gmra.mrb[0].mxu0 %v580
    %v653 = vpop.f32.mrb[0].mxu0
    %v654 = vadd.f32 0.0, %v653
    %v655 = vpop.f32.mrb[0].mxu0
    %656 = vmatprep.mubr.f32.mxu0 0.0
    %657 = vmatmul.mubr.f32.gmra.mrb[0].mxu0 %v583
    %v658 = vpop.f32.mrb[0].mxu0
    %v659 = vadd.f32 0.0, %v658
    %v660 = vpop.f32.mrb[0].mxu0
    %661 = vdwg.mxu0
    %v662 = vsel %vm482, %v578, 0
    %664 = vmatprep.subr.mxu0 0.0
    %665 = vmatpush1.msra.mxu0 %v662
    %666 = vmatprep.subr.mxu0 0.0
    %667 = vmatpush1.msra.mxu0 0.0
    %668 = vmatprep.subr.mxu0 0.0
    %669 = vmatpush1.msra.mxu0 0.0
    %670 = vmatprep.subr.mxu0 0.0
    %671 = vmatpush1.msra.mxu0 0.0
    %672 = vmatprep.subr.mxu0 0.0
    %673 = vmatpush1.msra.mxu0 0.0
    %674 = vmatprep.subr.mxu0 0.0
    %675 = vmatpush1.msra.mxu0 0.0
    %676 = vmatprep.subr.mxu0 0.0
    %677 = vmatpush1.msra.mxu0 0.0
    %678 = vmatprep.subr.mxu0 0.0
    %679 = vmatpush1.msra.mxu0 0.0
    %680 = vmatprep.subr.mxu0 0.0
    %681 = vmatpush1.msra.mxu0 0.0
    %682 = vmatprep.subr.mxu0 0.0
    %683 = vmatpush1.msra.mxu0 0.0
    %684 = vmatprep.subr.mxu0 0.0
    %685 = vmatpush1.msra.mxu0 0.0
    %686 = vmatprep.subr.mxu0 0.0
    %687 = vmatpush1.msra.mxu0 0.0
    %688 = vmatprep.subr.mxu0 0.0
    %689 = vmatpush1.msra.mxu0 0.0
    %690 = vmatprep.subr.mxu0 0.0
    %691 = vmatpush1.msra.mxu0 0.0
    %692 = vmatprep.subr.mxu0 0.0
    %693 = vmatpush1.msra.mxu0 0.0
    %694 = vmatprep.subr.mxu0 0.0
    %695 = vmatpush1.msra.mxu0 0.0
    %696 = vmatprep.subr.mxu0 0.0
    %697 = vmatpush1.msra.mxu0 0.0
    %698 = vmatprep.subr.mxu0 0.0
    %699 = vmatpush1.msra.mxu0 0.0
    %700 = vmatprep.subr.mxu0 0.0
    %701 = vmatpush1.msra.mxu0 0.0
    %702 = vmatprep.subr.mxu0 0.0
    %703 = vmatpush1.msra.mxu0 0.0
    %704 = vmatprep.subr.mxu0 0.0
    %705 = vmatpush1.msra.mxu0 0.0
    %706 = vmatprep.subr.mxu0 0.0
    %707 = vmatpush1.msra.mxu0 0.0
    %708 = vmatprep.subr.mxu0 0.0
    %709 = vmatpush1.msra.mxu0 0.0
    %710 = vmatprep.subr.mxu0 0.0
    %711 = vmatpush1.msra.mxu0 0.0
    %712 = vmatprep.subr.mxu0 0.0
    %713 = vmatpush1.msra.mxu0 0.0
    %714 = vmatprep.subr.mxu0 0.0
    %715 = vmatpush1.msra.mxu0 0.0
    %716 = vmatprep.subr.mxu0 0.0
    %717 = vmatpush1.msra.mxu0 0.0
    %718 = vmatprep.subr.mxu0 0.0
    %719 = vmatpush1.msra.mxu0 0.0
    %720 = vmatprep.subr.mxu0 0.0
    %721 = vmatpush1.msra.mxu0 0.0
    %722 = vmatprep.subr.mxu0 0.0
    %723 = vmatpush1.msra.mxu0 0.0
    %724 = vmatprep.subr.mxu0 0.0
    %725 = vmatpush1.msra.mxu0 0.0
    %726 = vmatprep.subr.mxu0 0.0
    %727 = vmatpush1.msra.mxu0 0.0
    %728 = vmatprep.mubr.f32.mxu0 0.0
    %729 = vmatmul.mubr.f32.gmra.mrb[0].mxu0 %v580
    %v730 = vpop.f32.mrb[0].mxu0
    %v731 = vadd.f32 0.0, %v730
    %v732 = vpop.f32.mrb[0].mxu0
    %733 = vmatprep.mubr.f32.mxu0 0.0
    %734 = vmatmul.mubr.f32.gmra.mrb[0].mxu0 %v583
    %v735 = vpop.f32.mrb[0].mxu0
    %v736 = vadd.f32 0.0, %v735
    %v737 = vpop.f32.mrb[0].mxu0
    %738 = vdwg.mxu0
    %s739 = scalar_lea.vmem [#allocation8], 64
    %740 = vst.msk [vmem:[%s739] sm:$0xff] %vm108, %v654
    %741 = vst.msk [vmem:[%s739 + $0x8] sm:$0xff] %vm108, %v659
    %742 = vst.msk [vmem:[%s739 + $0x80] sm:$0xff] %vm108, %v731
    %743 = vst.msk [vmem:[%s739 + $0x88] sm:$0xff] %vm108, %v736
    %v744 = vld [vmem:[#allocation7] sm:$0x3]
    %v745 = vld [vmem:[%s6] sm:$0xff]
    %v746 = vld [vmem:[%s6 + $0x8] sm:$0xff]
    %v747 = vld [vmem:[%s7] sm:$0xff]
    %v748 = vld [vmem:[%s7 + $0x8] sm:$0xff]
    %v749 = vld [vmem:[%s8] sm:$0x3]
    %750 = vmatprep.subr.mxu0 0.0
    %751 = vmatpush1.msra.mxu0 %v745
    %752 = vmatprep.subr.mxu0 0.0
    %753 = vmatpush1.msra.mxu0 %v746
    %754 = vmatprep.subr.mxu0 0.0
    %755 = vmatpush1.msra.mxu0 0.0
    %756 = vmatprep.subr.mxu0 0.0
    %757 = vmatpush1.msra.mxu0 0.0
    %758 = vmatprep.subr.mxu0 0.0
    %759 = vmatpush1.msra.mxu0 0.0
    %760 = vmatprep.subr.mxu0 0.0
    %761 = vmatpush1.msra.mxu0 0.0
    %762 = vmatprep.subr.mxu0 0.0
    %763 = vmatpush1.msra.mxu0 0.0
    %764 = vmatprep.subr.mxu0 0.0
    %765 = vmatpush1.msra.mxu0 0.0
    %766 = vmatprep.subr.mxu0 0.0
    %767 = vmatpush1.msra.mxu0 0.0
    %768 = vmatprep.subr.mxu0 0.0
    %769 = vmatpush1.msra.mxu0 0.0
    %770 = vmatprep.subr.mxu0 0.0
    %771 = vmatpush1.msra.mxu0 0.0
    %772 = vmatprep.subr.mxu0 0.0
    %773 = vmatpush1.msra.mxu0 0.0
    %774 = vmatprep.subr.mxu0 0.0
    %775 = vmatpush1.msra.mxu0 0.0
    %776 = vmatprep.subr.mxu0 0.0
    %777 = vmatpush1.msra.mxu0 0.0
    %778 = vmatprep.subr.mxu0 0.0
    %779 = vmatpush1.msra.mxu0 0.0
    %780 = vmatprep.subr.mxu0 0.0
    %781 = vmatpush1.msra.mxu0 0.0
    %782 = vmatprep.subr.mxu0 0.0
    %783 = vmatpush1.msra.mxu0 0.0
    %784 = vmatprep.subr.mxu0 0.0
    %785 = vmatpush1.msra.mxu0 0.0
    %786 = vmatprep.subr.mxu0 0.0
    %787 = vmatpush1.msra.mxu0 0.0
    %788 = vmatprep.subr.mxu0 0.0
    %789 = vmatpush1.msra.mxu0 0.0
    %790 = vmatprep.subr.mxu0 0.0
    %791 = vmatpush1.msra.mxu0 0.0
    %792 = vmatprep.subr.mxu0 0.0
    %793 = vmatpush1.msra.mxu0 0.0
    %794 = vmatprep.subr.mxu0 0.0
    %795 = vmatpush1.msra.mxu0 0.0
    %796 = vmatprep.subr.mxu0 0.0
    %797 = vmatpush1.msra.mxu0 0.0
    %798 = vmatprep.subr.mxu0 0.0
    %799 = vmatpush1.msra.mxu0 0.0
    %800 = vmatprep.subr.mxu0 0.0
    %801 = vmatpush1.msra.mxu0 0.0
    %802 = vmatprep.subr.mxu0 0.0
    %803 = vmatpush1.msra.mxu0 0.0
    %804 = vmatprep.subr.mxu0 0.0
    %805 = vmatpush1.msra.mxu0 0.0
    %806 = vmatprep.subr.mxu0 0.0
    %807 = vmatpush1.msra.mxu0 0.0
    %808 = vmatprep.subr.mxu0 0.0
    %809 = vmatpush1.msra.mxu0 0.0
    %810 = vmatprep.subr.mxu0 0.0
    %811 = vmatpush1.msra.mxu0 0.0
    %812 = vmatprep.subr.mxu0 0.0
    %813 = vmatpush1.msra.mxu0 0.0
    %814 = vmatprep.mubr.f32.mxu0 0.0
    %815 = vmatmul.mubr.f32.gmra.mrb[0].mxu0 %v132
    %v816 = vpop.f32.mrb[0].mxu0
    %v817 = vadd.f32 0.0, %v816
    %v818 = vpop.f32.mrb[0].mxu0
    %819 = vmatprep.mubr.f32.mxu0 0.0
    %820 = vmatmul.mubr.f32.gmra.mrb[0].mxu0 %v135
    %v821 = vpop.f32.mrb[0].mxu0
    %v822 = vadd.f32 0.0, %v821
    %v823 = vpop.f32.mrb[0].mxu0
    %824 = vmatprep.mubr.f32.mxu0 0.0
    %825 = vmatmul.mubr.f32.gmra.mrb[0].mxu0 %v138
    %v826 = vpop.f32.mrb[0].mxu0
    %v827 = vadd.f32 0.0, %v826
    %v828 = vpop.f32.mrb[0].mxu0
    %829 = vmatprep.mubr.f32.mxu0 0.0
    %830 = vmatmul.mubr.f32.gmra.mrb[0].mxu0 %v141
    %v831 = vpop.f32.mrb[0].mxu0
    %v832 = vadd.f32 0.0, %v831
    %v833 = vpop.f32.mrb[0].mxu0
    %834 = vmatprep.mubr.f32.mxu0 0.0
    %835 = vmatmul.mubr.f32.gmra.mrb[0].mxu0 %v144
    %v836 = vpop.f32.mrb[0].mxu0
    %v837 = vadd.f32 0.0, %v836
    %v838 = vpop.f32.mrb[0].mxu0
    %839 = vmatprep.mubr.f32.mxu0 0.0
    %840 = vmatmul.mubr.f32.gmra.mrb[0].mxu0 %v147
    %v841 = vpop.f32.mrb[0].mxu0
    %v842 = vadd.f32 0.0, %v841
    %v843 = vpop.f32.mrb[0].mxu0
    %844 = vmatprep.mubr.f32.mxu0 0.0
    %845 = vmatmul.mubr.f32.gmra.mrb[0].mxu0 %v150
    %v846 = vpop.f32.mrb[0].mxu0
    %v847 = vadd.f32 0.0, %v846
    %v848 = vpop.f32.mrb[0].mxu0
    %849 = vmatprep.mubr.f32.mxu0 0.0
    %850 = vmatmul.mubr.f32.gmra.mrb[0].mxu0 %v153
    %v851 = vpop.f32.mrb[0].mxu0
    %v852 = vadd.f32 0.0, %v851
    %v853 = vpop.f32.mrb[0].mxu0
    %854 = vmatprep.mubr.f32.mxu0 0.0
    %855 = vmatmul.mubr.f32.gmra.mrb[0].mxu0 %v156
    %v856 = vpop.f32.mrb[0].mxu0
    %v857 = vadd.f32 0.0, %v856
    %v858 = vpop.f32.mrb[0].mxu0
    %859 = vmatprep.mubr.f32.mxu0 0.0
    %860 = vmatmul.mubr.f32.gmra.mrb[0].mxu0 %v159
    %v861 = vpop.f32.mrb[0].mxu0
    %v862 = vadd.f32 0.0, %v861
    %v863 = vpop.f32.mrb[0].mxu0
    %864 = vmatprep.mubr.f32.mxu0 0.0
    %865 = vmatmul.mubr.f32.gmra.mrb[0].mxu0 %v162
    %v866 = vpop.f32.mrb[0].mxu0
    %v867 = vadd.f32 0.0, %v866
    %v868 = vpop.f32.mrb[0].mxu0
    %869 = vmatprep.mubr.f32.mxu0 0.0
    %870 = vmatmul.mubr.f32.gmra.mrb[0].mxu0 %v165
    %v871 = vpop.f32.mrb[0].mxu0
    %v872 = vadd.f32 0.0, %v871
    %v873 = vpop.f32.mrb[0].mxu0
    %874 = vmatprep.mubr.f32.mxu0 0.0
    %875 = vmatmul.mubr.f32.gmra.mrb[0].mxu0 %v168
    %v876 = vpop.f32.mrb[0].mxu0
    %v877 = vadd.f32 0.0, %v876
    %v878 = vpop.f32.mrb[0].mxu0
    %879 = vmatprep.mubr.f32.mxu0 0.0
    %880 = vmatmul.mubr.f32.gmra.mrb[0].mxu0 %v171
    %v881 = vpop.f32.mrb[0].mxu0
    %v882 = vadd.f32 0.0, %v881
    %v883 = vpop.f32.mrb[0].mxu0
    %884 = vmatprep.mubr.f32.mxu0 0.0
    %885 = vmatmul.mubr.f32.gmra.mrb[0].mxu0 %v174
    %v886 = vpop.f32.mrb[0].mxu0
    %v887 = vadd.f32 0.0, %v886
    %v888 = vpop.f32.mrb[0].mxu0
    %889 = vmatprep.mubr.f32.mxu0 0.0
    %890 = vmatmul.mubr.f32.gmra.mrb[0].mxu0 %v177
    %v891 = vpop.f32.mrb[0].mxu0
    %v892 = vadd.f32 0.0, %v891
    %v893 = vpop.f32.mrb[0].mxu0
    %894 = vdwg.mxu0
    %v896 = vsel %vm324, %v744, 0
    %898 = vmatprep.subr.mxu0 0.0
    %899 = vmatpush1.msra.mxu0 %v817
    %900 = vmatprep.subr.mxu0 0.0
    %901 = vmatpush1.msra.mxu0 %v822
    %902 = vmatprep.subr.mxu0 0.0
    %903 = vmatpush1.msra.mxu0 %v827
    %904 = vmatprep.subr.mxu0 0.0
    %905 = vmatpush1.msra.mxu0 %v832
    %906 = vmatprep.subr.mxu0 0.0
    %907 = vmatpush1.msra.mxu0 %v837
    %908 = vmatprep.subr.mxu0 0.0
    %909 = vmatpush1.msra.mxu0 %v842
    %910 = vmatprep.subr.mxu0 0.0
    %911 = vmatpush1.msra.mxu0 %v847
    %912 = vmatprep.subr.mxu0 0.0
    %913 = vmatpush1.msra.mxu0 %v852
    %914 = vmatprep.subr.mxu0 0.0
    %915 = vmatpush1.msra.mxu0 0.0
    %916 = vmatprep.subr.mxu0 0.0
    %917 = vmatpush1.msra.mxu0 0.0
    %918 = vmatprep.subr.mxu0 0.0
    %919 = vmatpush1.msra.mxu0 0.0
    %920 = vmatprep.subr.mxu0 0.0
    %921 = vmatpush1.msra.mxu0 0.0
    %922 = vmatprep.subr.mxu0 0.0
    %923 = vmatpush1.msra.mxu0 0.0
    %924 = vmatprep.subr.mxu0 0.0
    %925 = vmatpush1.msra.mxu0 0.0
    %926 = vmatprep.subr.mxu0 0.0
    %927 = vmatpush1.msra.mxu0 0.0
    %928 = vmatprep.subr.mxu0 0.0
    %929 = vmatpush1.msra.mxu0 0.0
    %930 = vmatprep.subr.mxu0 0.0
    %931 = vmatpush1.msra.mxu0 0.0
    %932 = vmatprep.subr.mxu0 0.0
    %933 = vmatpush1.msra.mxu0 0.0
    %934 = vmatprep.subr.mxu0 0.0
    %935 = vmatpush1.msra.mxu0 0.0
    %936 = vmatprep.subr.mxu0 0.0
    %937 = vmatpush1.msra.mxu0 0.0
    %938 = vmatprep.subr.mxu0 0.0
    %939 = vmatpush1.msra.mxu0 0.0
    %940 = vmatprep.subr.mxu0 0.0
    %941 = vmatpush1.msra.mxu0 0.0
    %942 = vmatprep.subr.mxu0 0.0
    %943 = vmatpush1.msra.mxu0 0.0
    %944 = vmatprep.subr.mxu0 0.0
    %945 = vmatpush1.msra.mxu0 0.0
    %946 = vmatprep.subr.mxu0 0.0
    %947 = vmatpush1.msra.mxu0 0.0
    %948 = vmatprep.subr.mxu0 0.0
    %949 = vmatpush1.msra.mxu0 0.0
    %950 = vmatprep.subr.mxu0 0.0
    %951 = vmatpush1.msra.mxu0 0.0
    %952 = vmatprep.subr.mxu0 0.0
    %953 = vmatpush1.msra.mxu0 0.0
    %954 = vmatprep.subr.mxu0 0.0
    %955 = vmatpush1.msra.mxu0 0.0
    %956 = vmatprep.subr.mxu0 0.0
    %957 = vmatpush1.msra.mxu0 0.0
    %958 = vmatprep.subr.mxu0 0.0
    %959 = vmatpush1.msra.mxu0 0.0
    %960 = vmatprep.subr.mxu0 0.0
    %961 = vmatpush1.msra.mxu0 0.0
    %962 = vmatprep.mubr.f32.mxu0 0.0
    %963 = vmatmul.mubr.f32.gmra.mrb[0].mxu0 %v896
    %v964 = vpop.f32.mrb[0].mxu0
    %v965 = vadd.f32 0.0, %v964
    %v966 = vpop.f32.mrb[0].mxu0
    %967 = vdwg.mxu0
    %968 = vmatprep.subr.mxu0 0.0
    %969 = vmatpush1.msra.mxu0 %v857
    %970 = vmatprep.subr.mxu0 0.0
    %971 = vmatpush1.msra.mxu0 %v862
    %972 = vmatprep.subr.mxu0 0.0
    %973 = vmatpush1.msra.mxu0 %v867
    %974 = vmatprep.subr.mxu0 0.0
    %975 = vmatpush1.msra.mxu0 %v872
    %976 = vmatprep.subr.mxu0 0.0
    %977 = vmatpush1.msra.mxu0 %v877
    %978 = vmatprep.subr.mxu0 0.0
    %979 = vmatpush1.msra.mxu0 %v882
    %980 = vmatprep.subr.mxu0 0.0
    %981 = vmatpush1.msra.mxu0 %v887
    %982 = vmatprep.subr.mxu0 0.0
    %983 = vmatpush1.msra.mxu0 %v892
    %984 = vmatprep.subr.mxu0 0.0
    %985 = vmatpush1.msra.mxu0 0.0
    %986 = vmatprep.subr.mxu0 0.0
    %987 = vmatpush1.msra.mxu0 0.0
    %988 = vmatprep.subr.mxu0 0.0
    %989 = vmatpush1.msra.mxu0 0.0
    %990 = vmatprep.subr.mxu0 0.0
    %991 = vmatpush1.msra.mxu0 0.0
    %992 = vmatprep.subr.mxu0 0.0
    %993 = vmatpush1.msra.mxu0 0.0
    %994 = vmatprep.subr.mxu0 0.0
    %995 = vmatpush1.msra.mxu0 0.0
    %996 = vmatprep.subr.mxu0 0.0
    %997 = vmatpush1.msra.mxu0 0.0
    %998 = vmatprep.subr.mxu0 0.0
    %999 = vmatpush1.msra.mxu0 0.0
    %1000 = vmatprep.subr.mxu0 0.0
    %1001 = vmatpush1.msra.mxu0 0.0
    %1002 = vmatprep.subr.mxu0 0.0
    %1003 = vmatpush1.msra.mxu0 0.0
    %1004 = vmatprep.subr.mxu0 0.0
    %1005 = vmatpush1.msra.mxu0 0.0
    %1006 = vmatprep.subr.mxu0 0.0
    %1007 = vmatpush1.msra.mxu0 0.0
    %1008 = vmatprep.subr.mxu0 0.0
    %1009 = vmatpush1.msra.mxu0 0.0
    %1010 = vmatprep.subr.mxu0 0.0
    %1011 = vmatpush1.msra.mxu0 0.0
    %1012 = vmatprep.subr.mxu0 0.0
    %1013 = vmatpush1.msra.mxu0 0.0
    %1014 = vmatprep.subr.mxu0 0.0
    %1015 = vmatpush1.msra.mxu0 0.0
    %1016 = vmatprep.subr.mxu0 0.0
    %1017 = vmatpush1.msra.mxu0 0.0
    %1018 = vmatprep.subr.mxu0 0.0
    %1019 = vmatpush1.msra.mxu0 0.0
    %1020 = vmatprep.subr.mxu0 0.0
    %1021 = vmatpush1.msra.mxu0 0.0
    %1022 = vmatprep.subr.mxu0 0.0
    %1023 = vmatpush1.msra.mxu0 0.0
    %1024 = vmatprep.subr.mxu0 0.0
    %1025 = vmatpush1.msra.mxu0 0.0
    %1026 = vmatprep.subr.mxu0 0.0
    %1027 = vmatpush1.msra.mxu0 0.0
    %1028 = vmatprep.subr.mxu0 0.0
    %1029 = vmatpush1.msra.mxu0 0.0
    %1030 = vmatprep.subr.mxu0 0.0
    %1031 = vmatpush1.msra.mxu0 0.0
    %1032 = vmatprep.mubr.f32.mxu0 0.0
    %1033 = vmatmul.mubr.f32.gmra.mrb[0].mxu0 %v896
    %v1034 = vpop.f32.mrb[0].mxu0
    %v1035 = vadd.f32 0.0, %v1034
    %v1036 = vpop.f32.mrb[0].mxu0
    %1037 = vdwg.mxu0
    %vm1038 = vcmp.ge.f32.partialorder %v965, 0.0
    %vm1039 = vcmp.ge.f32.partialorder %v1035, 0.0
    %v1040 = vmul.f32 %v965, 0.2
    %v1041 = vmul.f32 %v1035, 0.2
    %v1042 = vsel %vm1038, %v965, %v1040
    %v1043 = vsel %vm1039, %v1035, %v1041
    %v1046 = vcombine.low %v1042, %v1043
    %v1048 = vunpack.c.l.s4 1983009808
    %v1049 = vunpack.c.0.s8 %v1048
    %v1050 = vlaneseq
    %v1051 = vshrl.u32 %v1050, 7
    %v1052 = vsub.s32 %v1049, %v1051
    %v1053 = vrot.slane %v1046, %v1052
    %vm1054 = vcmask 15360
    %v1055 = vsel %vm1054, %v1053, 0
    %vm1057 = vcmask 1041408
    %v1059 = vsel %vm1057, %v749, 0
    %1061 = vmatprep.subr.mxu0 0.0
    %1062 = vmatpush1.msra.mxu0 %v1059
    %1063 = vmatprep.subr.mxu0 0.0
    %1064 = vmatpush1.msra.mxu0 0.0
    %1065 = vmatprep.subr.mxu0 0.0
    %1066 = vmatpush1.msra.mxu0 0.0
    %1067 = vmatprep.subr.mxu0 0.0
    %1068 = vmatpush1.msra.mxu0 0.0
    %1069 = vmatprep.subr.mxu0 0.0
    %1070 = vmatpush1.msra.mxu0 0.0
    %1071 = vmatprep.subr.mxu0 0.0
    %1072 = vmatpush1.msra.mxu0 0.0
    %1073 = vmatprep.subr.mxu0 0.0
    %1074 = vmatpush1.msra.mxu0 0.0
    %1075 = vmatprep.subr.mxu0 0.0
    %1076 = vmatpush1.msra.mxu0 0.0
    %1077 = vmatprep.subr.mxu0 0.0
    %1078 = vmatpush1.msra.mxu0 0.0
    %1079 = vmatprep.subr.mxu0 0.0
    %1080 = vmatpush1.msra.mxu0 0.0
    %1081 = vmatprep.subr.mxu0 0.0
    %1082 = vmatpush1.msra.mxu0 0.0
    %1083 = vmatprep.subr.mxu0 0.0
    %1084 = vmatpush1.msra.mxu0 0.0
    %1085 = vmatprep.subr.mxu0 0.0
    %1086 = vmatpush1.msra.mxu0 0.0
    %1087 = vmatprep.subr.mxu0 0.0
    %1088 = vmatpush1.msra.mxu0 0.0
    %1089 = vmatprep.subr.mxu0 0.0
    %1090 = vmatpush1.msra.mxu0 0.0
    %1091 = vmatprep.subr.mxu0 0.0
    %1092 = vmatpush1.msra.mxu0 0.0
    %1093 = vmatprep.subr.mxu0 0.0
    %1094 = vmatpush1.msra.mxu0 0.0
    %1095 = vmatprep.subr.mxu0 0.0
    %1096 = vmatpush1.msra.mxu0 0.0
    %1097 = vmatprep.subr.mxu0 0.0
    %1098 = vmatpush1.msra.mxu0 0.0
    %1099 = vmatprep.subr.mxu0 0.0
    %1100 = vmatpush1.msra.mxu0 0.0
    %1101 = vmatprep.subr.mxu0 0.0
    %1102 = vmatpush1.msra.mxu0 0.0
    %1103 = vmatprep.subr.mxu0 0.0
    %1104 = vmatpush1.msra.mxu0 0.0
    %1105 = vmatprep.subr.mxu0 0.0
    %1106 = vmatpush1.msra.mxu0 0.0
    %1107 = vmatprep.subr.mxu0 0.0
    %1108 = vmatpush1.msra.mxu0 0.0
    %1109 = vmatprep.subr.mxu0 0.0
    %1110 = vmatpush1.msra.mxu0 0.0
    %1111 = vmatprep.subr.mxu0 0.0
    %1112 = vmatpush1.msra.mxu0 0.0
    %1113 = vmatprep.subr.mxu0 0.0
    %1114 = vmatpush1.msra.mxu0 0.0
    %1115 = vmatprep.subr.mxu0 0.0
    %1116 = vmatpush1.msra.mxu0 0.0
    %1117 = vmatprep.subr.mxu0 0.0
    %1118 = vmatpush1.msra.mxu0 0.0
    %1119 = vmatprep.subr.mxu0 0.0
    %1120 = vmatpush1.msra.mxu0 0.0
    %1121 = vmatprep.subr.mxu0 0.0
    %1122 = vmatpush1.msra.mxu0 0.0
    %1123 = vmatprep.subr.mxu0 0.0
    %1124 = vmatpush1.msra.mxu0 0.0
    %1125 = vmatprep.mubr.f32.mxu0 0.0
    %1126 = vmatmul.mubr.f32.gmra.mrb[0].mxu0 %v1055
    %v1127 = vpop.f32.mrb[0].mxu0
    %v1128 = vadd.f32 0.0, %v1127
    %v1129 = vpop.f32.mrb[0].mxu0
    %1130 = vdwg.mxu0
    %v1133 = vunpack.c.l.s4 1983009808
    %v1134 = vunpack.c.0.s8 %v1133
    %v1135 = vlaneseq
    %v1136 = vshrl.u32 %v1135, 7
    %v1137 = vsub.s32 %v1134, %v1136
    %v1138 = vrot.slane %v1128, %v1137
    %v1139 = vcombine.high %v1138, %v1138
    %v1141 = vsel %vm1054, %v747, 0
    %v1144 = vsel %vm1054, %v748, 0
    %v1146 = vsel %vm1057, %v1138, 0
    %1148 = vmatprep.subr.mxu0 0.0
    %1149 = vmatpush1.msra.mxu0 %v1146
    %1150 = vmatprep.subr.mxu0 0.0
    %1151 = vmatpush1.msra.mxu0 0.0
    %1152 = vmatprep.subr.mxu0 0.0
    %1153 = vmatpush1.msra.mxu0 0.0
    %1154 = vmatprep.subr.mxu0 0.0
    %1155 = vmatpush1.msra.mxu0 0.0
    %1156 = vmatprep.subr.mxu0 0.0
    %1157 = vmatpush1.msra.mxu0 0.0
    %1158 = vmatprep.subr.mxu0 0.0
    %1159 = vmatpush1.msra.mxu0 0.0
    %1160 = vmatprep.subr.mxu0 0.0
    %1161 = vmatpush1.msra.mxu0 0.0
    %1162 = vmatprep.subr.mxu0 0.0
    %1163 = vmatpush1.msra.mxu0 0.0
    %1164 = vmatprep.subr.mxu0 0.0
    %1165 = vmatpush1.msra.mxu0 0.0
    %1166 = vmatprep.subr.mxu0 0.0
    %1167 = vmatpush1.msra.mxu0 0.0
    %1168 = vmatprep.subr.mxu0 0.0
    %1169 = vmatpush1.msra.mxu0 0.0
    %1170 = vmatprep.subr.mxu0 0.0
    %1171 = vmatpush1.msra.mxu0 0.0
    %1172 = vmatprep.subr.mxu0 0.0
    %1173 = vmatpush1.msra.mxu0 0.0
    %1174 = vmatprep.subr.mxu0 0.0
    %1175 = vmatpush1.msra.mxu0 0.0
    %1176 = vmatprep.subr.mxu0 0.0
    %1177 = vmatpush1.msra.mxu0 0.0
    %1178 = vmatprep.subr.mxu0 0.0
    %1179 = vmatpush1.msra.mxu0 0.0
    %1180 = vmatprep.subr.mxu0 0.0
    %1181 = vmatpush1.msra.mxu0 0.0
    %1182 = vmatprep.subr.mxu0 0.0
    %1183 = vmatpush1.msra.mxu0 0.0
    %1184 = vmatprep.subr.mxu0 0.0
    %1185 = vmatpush1.msra.mxu0 0.0
    %1186 = vmatprep.subr.mxu0 0.0
    %1187 = vmatpush1.msra.mxu0 0.0
    %1188 = vmatprep.subr.mxu0 0.0
    %1189 = vmatpush1.msra.mxu0 0.0
    %1190 = vmatprep.subr.mxu0 0.0
    %1191 = vmatpush1.msra.mxu0 0.0
    %1192 = vmatprep.subr.mxu0 0.0
    %1193 = vmatpush1.msra.mxu0 0.0
    %1194 = vmatprep.subr.mxu0 0.0
    %1195 = vmatpush1.msra.mxu0 0.0
    %1196 = vmatprep.subr.mxu0 0.0
    %1197 = vmatpush1.msra.mxu0 0.0
    %1198 = vmatprep.subr.mxu0 0.0
    %1199 = vmatpush1.msra.mxu0 0.0
    %1200 = vmatprep.subr.mxu0 0.0
    %1201 = vmatpush1.msra.mxu0 0.0
    %1202 = vmatprep.subr.mxu0 0.0
    %1203 = vmatpush1.msra.mxu0 0.0
    %1204 = vmatprep.subr.mxu0 0.0
    %1205 = vmatpush1.msra.mxu0 0.0
    %1206 = vmatprep.subr.mxu0 0.0
    %1207 = vmatpush1.msra.mxu0 0.0
    %1208 = vmatprep.subr.mxu0 0.0
    %1209 = vmatpush1.msra.mxu0 0.0
    %1210 = vmatprep.subr.mxu0 0.0
    %1211 = vmatpush1.msra.mxu0 0.0
    %1212 = vmatprep.mubr.f32.mxu0 0.0
    %1213 = vmatmul.mubr.f32.gmra.mrb[0].mxu0 %v1141
    %v1214 = vpop.f32.mrb[0].mxu0
    %v1215 = vadd.f32 0.0, %v1214
    %v1216 = vpop.f32.mrb[0].mxu0
    %1217 = vmatprep.mubr.f32.mxu0 0.0
    %1218 = vmatmul.mubr.f32.gmra.mrb[0].mxu0 %v1144
    %v1219 = vpop.f32.mrb[0].mxu0
    %v1220 = vadd.f32 0.0, %v1219
    %v1221 = vpop.f32.mrb[0].mxu0
    %1222 = vdwg.mxu0
    %v1223 = vsel %vm1057, %v1139, 0
    %1225 = vmatprep.subr.mxu0 0.0
    %1226 = vmatpush1.msra.mxu0 %v1223
    %1227 = vmatprep.subr.mxu0 0.0
    %1228 = vmatpush1.msra.mxu0 0.0
    %1229 = vmatprep.subr.mxu0 0.0
    %1230 = vmatpush1.msra.mxu0 0.0
    %1231 = vmatprep.subr.mxu0 0.0
    %1232 = vmatpush1.msra.mxu0 0.0
    %1233 = vmatprep.subr.mxu0 0.0
    %1234 = vmatpush1.msra.mxu0 0.0
    %1235 = vmatprep.subr.mxu0 0.0
    %1236 = vmatpush1.msra.mxu0 0.0
    %1237 = vmatprep.subr.mxu0 0.0
    %1238 = vmatpush1.msra.mxu0 0.0
    %1239 = vmatprep.subr.mxu0 0.0
    %1240 = vmatpush1.msra.mxu0 0.0
    %1241 = vmatprep.subr.mxu0 0.0
    %1242 = vmatpush1.msra.mxu0 0.0
    %1243 = vmatprep.subr.mxu0 0.0
    %1244 = vmatpush1.msra.mxu0 0.0
    %1245 = vmatprep.subr.mxu0 0.0
    %1246 = vmatpush1.msra.mxu0 0.0
    %1247 = vmatprep.subr.mxu0 0.0
    %1248 = vmatpush1.msra.mxu0 0.0
    %1249 = vmatprep.subr.mxu0 0.0
    %1250 = vmatpush1.msra.mxu0 0.0
    %1251 = vmatprep.subr.mxu0 0.0
    %1252 = vmatpush1.msra.mxu0 0.0
    %1253 = vmatprep.subr.mxu0 0.0
    %1254 = vmatpush1.msra.mxu0 0.0
    %1255 = vmatprep.subr.mxu0 0.0
    %1256 = vmatpush1.msra.mxu0 0.0
    %1257 = vmatprep.subr.mxu0 0.0
    %1258 = vmatpush1.msra.mxu0 0.0
    %1259 = vmatprep.subr.mxu0 0.0
    %1260 = vmatpush1.msra.mxu0 0.0
    %1261 = vmatprep.subr.mxu0 0.0
    %1262 = vmatpush1.msra.mxu0 0.0
    %1263 = vmatprep.subr.mxu0 0.0
    %1264 = vmatpush1.msra.mxu0 0.0
    %1265 = vmatprep.subr.mxu0 0.0
    %1266 = vmatpush1.msra.mxu0 0.0
    %1267 = vmatprep.subr.mxu0 0.0
    %1268 = vmatpush1.msra.mxu0 0.0
    %1269 = vmatprep.subr.mxu0 0.0
    %1270 = vmatpush1.msra.mxu0 0.0
    %1271 = vmatprep.subr.mxu0 0.0
    %1272 = vmatpush1.msra.mxu0 0.0
    %1273 = vmatprep.subr.mxu0 0.0
    %1274 = vmatpush1.msra.mxu0 0.0
    %1275 = vmatprep.subr.mxu0 0.0
    %1276 = vmatpush1.msra.mxu0 0.0
    %1277 = vmatprep.subr.mxu0 0.0
    %1278 = vmatpush1.msra.mxu0 0.0
    %1279 = vmatprep.subr.mxu0 0.0
    %1280 = vmatpush1.msra.mxu0 0.0
    %1281 = vmatprep.subr.mxu0 0.0
    %1282 = vmatpush1.msra.mxu0 0.0
    %1283 = vmatprep.subr.mxu0 0.0
    %1284 = vmatpush1.msra.mxu0 0.0
    %1285 = vmatprep.subr.mxu0 0.0
    %1286 = vmatpush1.msra.mxu0 0.0
    %1287 = vmatprep.subr.mxu0 0.0
    %1288 = vmatpush1.msra.mxu0 0.0
    %1289 = vmatprep.mubr.f32.mxu0 0.0
    %1290 = vmatmul.mubr.f32.gmra.mrb[0].mxu0 %v1141
    %v1291 = vpop.f32.mrb[0].mxu0
    %v1292 = vadd.f32 0.0, %v1291
    %v1293 = vpop.f32.mrb[0].mxu0
    %1294 = vmatprep.mubr.f32.mxu0 0.0
    %1295 = vmatmul.mubr.f32.gmra.mrb[0].mxu0 %v1144
    %v1296 = vpop.f32.mrb[0].mxu0
    %v1297 = vadd.f32 0.0, %v1296
    %v1298 = vpop.f32.mrb[0].mxu0
    %1299 = vdwg.mxu0
    %s1300 = scalar_lea.vmem [#allocation8], 80
    %1301 = vst.msk [vmem:[%s1300] sm:$0xff] %vm108, %v1215
    %1302 = vst.msk [vmem:[%s1300 + $0x8] sm:$0xff] %vm108, %v1220
    %1303 = vst.msk [vmem:[%s1300 + $0x80] sm:$0xff] %vm108, %v1292
    %1304 = vst.msk [vmem:[%s1300 + $0x88] sm:$0xff] %vm108, %v1297
    %v1305 = vld [vmem:[%s9] sm:$0xf]
    %v1306 = vld [vmem:[%s10] sm:$0xff]
    %v1307 = vld [vmem:[%s10 + $0x8] sm:$0xff]
    %v1308 = vld [vmem:[%s11] sm:$0xff]
    %v1309 = vld [vmem:[%s11 + $0x8] sm:$0xff]
    %v1310 = vld [vmem:[%s12] sm:$0xf]
    %1311 = vmatprep.subr.mxu0 0.0
    %1312 = vmatpush1.msra.mxu0 %v1306
    %1313 = vmatprep.subr.mxu0 0.0
    %1314 = vmatpush1.msra.mxu0 %v1307
    %1315 = vmatprep.subr.mxu0 0.0
    %1316 = vmatpush1.msra.mxu0 0.0
    %1317 = vmatprep.subr.mxu0 0.0
    %1318 = vmatpush1.msra.mxu0 0.0
    %1319 = vmatprep.subr.mxu0 0.0
    %1320 = vmatpush1.msra.mxu0 0.0
    %1321 = vmatprep.subr.mxu0 0.0
    %1322 = vmatpush1.msra.mxu0 0.0
    %1323 = vmatprep.subr.mxu0 0.0
    %1324 = vmatpush1.msra.mxu0 0.0
    %1325 = vmatprep.subr.mxu0 0.0
    %1326 = vmatpush1.msra.mxu0 0.0
    %1327 = vmatprep.subr.mxu0 0.0
    %1328 = vmatpush1.msra.mxu0 0.0
    %1329 = vmatprep.subr.mxu0 0.0
    %1330 = vmatpush1.msra.mxu0 0.0
    %1331 = vmatprep.subr.mxu0 0.0
    %1332 = vmatpush1.msra.mxu0 0.0
    %1333 = vmatprep.subr.mxu0 0.0
    %1334 = vmatpush1.msra.mxu0 0.0
    %1335 = vmatprep.subr.mxu0 0.0
    %1336 = vmatpush1.msra.mxu0 0.0
    %1337 = vmatprep.subr.mxu0 0.0
    %1338 = vmatpush1.msra.mxu0 0.0
    %1339 = vmatprep.subr.mxu0 0.0
    %1340 = vmatpush1.msra.mxu0 0.0
    %1341 = vmatprep.subr.mxu0 0.0
    %1342 = vmatpush1.msra.mxu0 0.0
    %1343 = vmatprep.subr.mxu0 0.0
    %1344 = vmatpush1.msra.mxu0 0.0
    %1345 = vmatprep.subr.mxu0 0.0
    %1346 = vmatpush1.msra.mxu0 0.0
    %1347 = vmatprep.subr.mxu0 0.0
    %1348 = vmatpush1.msra.mxu0 0.0
    %1349 = vmatprep.subr.mxu0 0.0
    %1350 = vmatpush1.msra.mxu0 0.0
    %1351 = vmatprep.subr.mxu0 0.0
    %1352 = vmatpush1.msra.mxu0 0.0
    %1353 = vmatprep.subr.mxu0 0.0
    %1354 = vmatpush1.msra.mxu0 0.0
    %1355 = vmatprep.subr.mxu0 0.0
    %1356 = vmatpush1.msra.mxu0 0.0
    %1357 = vmatprep.subr.mxu0 0.0
    %1358 = vmatpush1.msra.mxu0 0.0
    %1359 = vmatprep.subr.mxu0 0.0
    %1360 = vmatpush1.msra.mxu0 0.0
    %1361 = vmatprep.subr.mxu0 0.0
    %1362 = vmatpush1.msra.mxu0 0.0
    %1363 = vmatprep.subr.mxu0 0.0
    %1364 = vmatpush1.msra.mxu0 0.0
    %1365 = vmatprep.subr.mxu0 0.0
    %1366 = vmatpush1.msra.mxu0 0.0
    %1367 = vmatprep.subr.mxu0 0.0
    %1368 = vmatpush1.msra.mxu0 0.0
    %1369 = vmatprep.subr.mxu0 0.0
    %1370 = vmatpush1.msra.mxu0 0.0
    %1371 = vmatprep.subr.mxu0 0.0
    %1372 = vmatpush1.msra.mxu0 0.0
    %1373 = vmatprep.subr.mxu0 0.0
    %1374 = vmatpush1.msra.mxu0 0.0
    %1375 = vmatprep.mubr.f32.mxu0 0.0
    %1376 = vmatmul.mubr.f32.gmra.mrb[0].mxu0 %v132
    %v1377 = vpop.f32.mrb[0].mxu0
    %v1378 = vadd.f32 0.0, %v1377
    %v1379 = vpop.f32.mrb[0].mxu0
    %1380 = vmatprep.mubr.f32.mxu0 0.0
    %1381 = vmatmul.mubr.f32.gmra.mrb[0].mxu0 %v135
    %v1382 = vpop.f32.mrb[0].mxu0
    %v1383 = vadd.f32 0.0, %v1382
    %v1384 = vpop.f32.mrb[0].mxu0
    %1385 = vmatprep.mubr.f32.mxu0 0.0
    %1386 = vmatmul.mubr.f32.gmra.mrb[0].mxu0 %v138
    %v1387 = vpop.f32.mrb[0].mxu0
    %v1388 = vadd.f32 0.0, %v1387
    %v1389 = vpop.f32.mrb[0].mxu0
    %1390 = vmatprep.mubr.f32.mxu0 0.0
    %1391 = vmatmul.mubr.f32.gmra.mrb[0].mxu0 %v141
    %v1392 = vpop.f32.mrb[0].mxu0
    %v1393 = vadd.f32 0.0, %v1392
    %v1394 = vpop.f32.mrb[0].mxu0
    %1395 = vmatprep.mubr.f32.mxu0 0.0
    %1396 = vmatmul.mubr.f32.gmra.mrb[0].mxu0 %v144
    %v1397 = vpop.f32.mrb[0].mxu0
    %v1398 = vadd.f32 0.0, %v1397
    %v1399 = vpop.f32.mrb[0].mxu0
    %1400 = vmatprep.mubr.f32.mxu0 0.0
    %1401 = vmatmul.mubr.f32.gmra.mrb[0].mxu0 %v147
    %v1402 = vpop.f32.mrb[0].mxu0
    %v1403 = vadd.f32 0.0, %v1402
    %v1404 = vpop.f32.mrb[0].mxu0
    %1405 = vmatprep.mubr.f32.mxu0 0.0
    %1406 = vmatmul.mubr.f32.gmra.mrb[0].mxu0 %v150
    %v1407 = vpop.f32.mrb[0].mxu0
    %v1408 = vadd.f32 0.0, %v1407
    %v1409 = vpop.f32.mrb[0].mxu0
    %1410 = vmatprep.mubr.f32.mxu0 0.0
    %1411 = vmatmul.mubr.f32.gmra.mrb[0].mxu0 %v153
    %v1412 = vpop.f32.mrb[0].mxu0
    %v1413 = vadd.f32 0.0, %v1412
    %v1414 = vpop.f32.mrb[0].mxu0
    %1415 = vmatprep.mubr.f32.mxu0 0.0
    %1416 = vmatmul.mubr.f32.gmra.mrb[0].mxu0 %v156
    %v1417 = vpop.f32.mrb[0].mxu0
    %v1418 = vadd.f32 0.0, %v1417
    %v1419 = vpop.f32.mrb[0].mxu0
    %1420 = vmatprep.mubr.f32.mxu0 0.0
    %1421 = vmatmul.mubr.f32.gmra.mrb[0].mxu0 %v159
    %v1422 = vpop.f32.mrb[0].mxu0
    %v1423 = vadd.f32 0.0, %v1422
    %v1424 = vpop.f32.mrb[0].mxu0
    %1425 = vmatprep.mubr.f32.mxu0 0.0
    %1426 = vmatmul.mubr.f32.gmra.mrb[0].mxu0 %v162
    %v1427 = vpop.f32.mrb[0].mxu0
    %v1428 = vadd.f32 0.0, %v1427
    %v1429 = vpop.f32.mrb[0].mxu0
    %1430 = vmatprep.mubr.f32.mxu0 0.0
    %1431 = vmatmul.mubr.f32.gmra.mrb[0].mxu0 %v165
    %v1432 = vpop.f32.mrb[0].mxu0
    %v1433 = vadd.f32 0.0, %v1432
    %v1434 = vpop.f32.mrb[0].mxu0
    %1435 = vmatprep.mubr.f32.mxu0 0.0
    %1436 = vmatmul.mubr.f32.gmra.mrb[0].mxu0 %v168
    %v1437 = vpop.f32.mrb[0].mxu0
    %v1438 = vadd.f32 0.0, %v1437
    %v1439 = vpop.f32.mrb[0].mxu0
    %1440 = vmatprep.mubr.f32.mxu0 0.0
    %1441 = vmatmul.mubr.f32.gmra.mrb[0].mxu0 %v171
    %v1442 = vpop.f32.mrb[0].mxu0
    %v1443 = vadd.f32 0.0, %v1442
    %v1444 = vpop.f32.mrb[0].mxu0
    %1445 = vmatprep.mubr.f32.mxu0 0.0
    %1446 = vmatmul.mubr.f32.gmra.mrb[0].mxu0 %v174
    %v1447 = vpop.f32.mrb[0].mxu0
    %v1448 = vadd.f32 0.0, %v1447
    %v1449 = vpop.f32.mrb[0].mxu0
    %1450 = vmatprep.mubr.f32.mxu0 0.0
    %1451 = vmatmul.mubr.f32.gmra.mrb[0].mxu0 %v177
    %v1452 = vpop.f32.mrb[0].mxu0
    %v1453 = vadd.f32 0.0, %v1452
    %v1454 = vpop.f32.mrb[0].mxu0
    %1455 = vdwg.mxu0
    %v1457 = vsel %vm324, %v1305, 0
    %1459 = vmatprep.subr.mxu0 0.0
    %1460 = vmatpush1.msra.mxu0 %v1378
    %1461 = vmatprep.subr.mxu0 0.0
    %1462 = vmatpush1.msra.mxu0 %v1383
    %1463 = vmatprep.subr.mxu0 0.0
    %1464 = vmatpush1.msra.mxu0 %v1388
    %1465 = vmatprep.subr.mxu0 0.0
    %1466 = vmatpush1.msra.mxu0 %v1393
    %1467 = vmatprep.subr.mxu0 0.0
    %1468 = vmatpush1.msra.mxu0 %v1398
    %1469 = vmatprep.subr.mxu0 0.0
    %1470 = vmatpush1.msra.mxu0 %v1403
    %1471 = vmatprep.subr.mxu0 0.0
    %1472 = vmatpush1.msra.mxu0 %v1408
    %1473 = vmatprep.subr.mxu0 0.0
    %1474 = vmatpush1.msra.mxu0 %v1413
    %1475 = vmatprep.subr.mxu0 0.0
    %1476 = vmatpush1.msra.mxu0 0.0
    %1477 = vmatprep.subr.mxu0 0.0
    %1478 = vmatpush1.msra.mxu0 0.0
    %1479 = vmatprep.subr.mxu0 0.0
    %1480 = vmatpush1.msra.mxu0 0.0
    %1481 = vmatprep.subr.mxu0 0.0
    %1482 = vmatpush1.msra.mxu0 0.0
    %1483 = vmatprep.subr.mxu0 0.0
    %1484 = vmatpush1.msra.mxu0 0.0
    %1485 = vmatprep.subr.mxu0 0.0
    %1486 = vmatpush1.msra.mxu0 0.0
    %1487 = vmatprep.subr.mxu0 0.0
    %1488 = vmatpush1.msra.mxu0 0.0
    %1489 = vmatprep.subr.mxu0 0.0
    %1490 = vmatpush1.msra.mxu0 0.0
    %1491 = vmatprep.subr.mxu0 0.0
    %1492 = vmatpush1.msra.mxu0 0.0
    %1493 = vmatprep.subr.mxu0 0.0
    %1494 = vmatpush1.msra.mxu0 0.0
    %1495 = vmatprep.subr.mxu0 0.0
    %1496 = vmatpush1.msra.mxu0 0.0
    %1497 = vmatprep.subr.mxu0 0.0
    %1498 = vmatpush1.msra.mxu0 0.0
    %1499 = vmatprep.subr.mxu0 0.0
    %1500 = vmatpush1.msra.mxu0 0.0
    %1501 = vmatprep.subr.mxu0 0.0
    %1502 = vmatpush1.msra.mxu0 0.0
    %1503 = vmatprep.subr.mxu0 0.0
    %1504 = vmatpush1.msra.mxu0 0.0
    %1505 = vmatprep.subr.mxu0 0.0
    %1506 = vmatpush1.msra.mxu0 0.0
    %1507 = vmatprep.subr.mxu0 0.0
    %1508 = vmatpush1.msra.mxu0 0.0
    %1509 = vmatprep.subr.mxu0 0.0
    %1510 = vmatpush1.msra.mxu0 0.0
    %1511 = vmatprep.subr.mxu0 0.0
    %1512 = vmatpush1.msra.mxu0 0.0
    %1513 = vmatprep.subr.mxu0 0.0
    %1514 = vmatpush1.msra.mxu0 0.0
    %1515 = vmatprep.subr.mxu0 0.0
    %1516 = vmatpush1.msra.mxu0 0.0
    %1517 = vmatprep.subr.mxu0 0.0
    %1518 = vmatpush1.msra.mxu0 0.0
    %1519 = vmatprep.subr.mxu0 0.0
    %1520 = vmatpush1.msra.mxu0 0.0
    %1521 = vmatprep.subr.mxu0 0.0
    %1522 = vmatpush1.msra.mxu0 0.0
    %1523 = vmatprep.mubr.f32.mxu0 0.0
    %1524 = vmatmul.mubr.f32.gmra.mrb[0].mxu0 %v1457
    %v1525 = vpop.f32.mrb[0].mxu0
    %v1526 = vadd.f32 0.0, %v1525
    %v1527 = vpop.f32.mrb[0].mxu0
    %1528 = vdwg.mxu0
    %1529 = vmatprep.subr.mxu0 0.0
    %1530 = vmatpush1.msra.mxu0 %v1418
    %1531 = vmatprep.subr.mxu0 0.0
    %1532 = vmatpush1.msra.mxu0 %v1423
    %1533 = vmatprep.subr.mxu0 0.0
    %1534 = vmatpush1.msra.mxu0 %v1428
    %1535 = vmatprep.subr.mxu0 0.0
    %1536 = vmatpush1.msra.mxu0 %v1433
    %1537 = vmatprep.subr.mxu0 0.0
    %1538 = vmatpush1.msra.mxu0 %v1438
    %1539 = vmatprep.subr.mxu0 0.0
    %1540 = vmatpush1.msra.mxu0 %v1443
    %1541 = vmatprep.subr.mxu0 0.0
    %1542 = vmatpush1.msra.mxu0 %v1448
    %1543 = vmatprep.subr.mxu0 0.0
    %1544 = vmatpush1.msra.mxu0 %v1453
    %1545 = vmatprep.subr.mxu0 0.0
    %1546 = vmatpush1.msra.mxu0 0.0
    %1547 = vmatprep.subr.mxu0 0.0
    %1548 = vmatpush1.msra.mxu0 0.0
    %1549 = vmatprep.subr.mxu0 0.0
    %1550 = vmatpush1.msra.mxu0 0.0
    %1551 = vmatprep.subr.mxu0 0.0
    %1552 = vmatpush1.msra.mxu0 0.0
    %1553 = vmatprep.subr.mxu0 0.0
    %1554 = vmatpush1.msra.mxu0 0.0
    %1555 = vmatprep.subr.mxu0 0.0
    %1556 = vmatpush1.msra.mxu0 0.0
    %1557 = vmatprep.subr.mxu0 0.0
    %1558 = vmatpush1.msra.mxu0 0.0
    %1559 = vmatprep.subr.mxu0 0.0
    %1560 = vmatpush1.msra.mxu0 0.0
    %1561 = vmatprep.subr.mxu0 0.0
    %1562 = vmatpush1.msra.mxu0 0.0
    %1563 = vmatprep.subr.mxu0 0.0
    %1564 = vmatpush1.msra.mxu0 0.0
    %1565 = vmatprep.subr.mxu0 0.0
    %1566 = vmatpush1.msra.mxu0 0.0
    %1567 = vmatprep.subr.mxu0 0.0
    %1568 = vmatpush1.msra.mxu0 0.0
    %1569 = vmatprep.subr.mxu0 0.0
    %1570 = vmatpush1.msra.mxu0 0.0
    %1571 = vmatprep.subr.mxu0 0.0
    %1572 = vmatpush1.msra.mxu0 0.0
    %1573 = vmatprep.subr.mxu0 0.0
    %1574 = vmatpush1.msra.mxu0 0.0
    %1575 = vmatprep.subr.mxu0 0.0
    %1576 = vmatpush1.msra.mxu0 0.0
    %1577 = vmatprep.subr.mxu0 0.0
    %1578 = vmatpush1.msra.mxu0 0.0
    %1579 = vmatprep.subr.mxu0 0.0
    %1580 = vmatpush1.msra.mxu0 0.0
    %1581 = vmatprep.subr.mxu0 0.0
    %1582 = vmatpush1.msra.mxu0 0.0
    %1583 = vmatprep.subr.mxu0 0.0
    %1584 = vmatpush1.msra.mxu0 0.0
    %1585 = vmatprep.subr.mxu0 0.0
    %1586 = vmatpush1.msra.mxu0 0.0
    %1587 = vmatprep.subr.mxu0 0.0
    %1588 = vmatpush1.msra.mxu0 0.0
    %1589 = vmatprep.subr.mxu0 0.0
    %1590 = vmatpush1.msra.mxu0 0.0
    %1591 = vmatprep.subr.mxu0 0.0
    %1592 = vmatpush1.msra.mxu0 0.0
    %1593 = vmatprep.mubr.f32.mxu0 0.0
    %1594 = vmatmul.mubr.f32.gmra.mrb[0].mxu0 %v1457
    %v1595 = vpop.f32.mrb[0].mxu0
    %v1596 = vadd.f32 0.0, %v1595
    %v1597 = vpop.f32.mrb[0].mxu0
    %1598 = vdwg.mxu0
    %vm1599 = vcmp.ge.f32.partialorder %v1526, 0.0
    %vm1600 = vcmp.ge.f32.partialorder %v1596, 0.0
    %v1601 = vmul.f32 %v1526, 0.2
    %v1602 = vmul.f32 %v1596, 0.2
    %v1603 = vsel %vm1599, %v1526, %v1601
    %v1604 = vsel %vm1600, %v1596, %v1602
    %v1607 = vcombine.low %v1603, %v1604
    %vm1608 = vcmask 31744
    %v1609 = vsel %vm1608, %v1607, 0
    %vm1611 = vcmask 1043456
    %v1613 = vsel %vm1611, %v1310, 0
    %1615 = vmatprep.subr.mxu0 0.0
    %1616 = vmatpush1.msra.mxu0 %v1613
    %1617 = vmatprep.subr.mxu0 0.0
    %1618 = vmatpush1.msra.mxu0 0.0
    %1619 = vmatprep.subr.mxu0 0.0
    %1620 = vmatpush1.msra.mxu0 0.0
    %1621 = vmatprep.subr.mxu0 0.0
    %1622 = vmatpush1.msra.mxu0 0.0
    %1623 = vmatprep.subr.mxu0 0.0
    %1624 = vmatpush1.msra.mxu0 0.0
    %1625 = vmatprep.subr.mxu0 0.0
    %1626 = vmatpush1.msra.mxu0 0.0
    %1627 = vmatprep.subr.mxu0 0.0
    %1628 = vmatpush1.msra.mxu0 0.0
    %1629 = vmatprep.subr.mxu0 0.0
    %1630 = vmatpush1.msra.mxu0 0.0
    %1631 = vmatprep.subr.mxu0 0.0
    %1632 = vmatpush1.msra.mxu0 0.0
    %1633 = vmatprep.subr.mxu0 0.0
    %1634 = vmatpush1.msra.mxu0 0.0
    %1635 = vmatprep.subr.mxu0 0.0
    %1636 = vmatpush1.msra.mxu0 0.0
    %1637 = vmatprep.subr.mxu0 0.0
    %1638 = vmatpush1.msra.mxu0 0.0
    %1639 = vmatprep.subr.mxu0 0.0
    %1640 = vmatpush1.msra.mxu0 0.0
    %1641 = vmatprep.subr.mxu0 0.0
    %1642 = vmatpush1.msra.mxu0 0.0
    %1643 = vmatprep.subr.mxu0 0.0
    %1644 = vmatpush1.msra.mxu0 0.0
    %1645 = vmatprep.subr.mxu0 0.0
    %1646 = vmatpush1.msra.mxu0 0.0
    %1647 = vmatprep.subr.mxu0 0.0
    %1648 = vmatpush1.msra.mxu0 0.0
    %1649 = vmatprep.subr.mxu0 0.0
    %1650 = vmatpush1.msra.mxu0 0.0
    %1651 = vmatprep.subr.mxu0 0.0
    %1652 = vmatpush1.msra.mxu0 0.0
    %1653 = vmatprep.subr.mxu0 0.0
    %1654 = vmatpush1.msra.mxu0 0.0
    %1655 = vmatprep.subr.mxu0 0.0
    %1656 = vmatpush1.msra.mxu0 0.0
    %1657 = vmatprep.subr.mxu0 0.0
    %1658 = vmatpush1.msra.mxu0 0.0
    %1659 = vmatprep.subr.mxu0 0.0
    %1660 = vmatpush1.msra.mxu0 0.0
    %1661 = vmatprep.subr.mxu0 0.0
    %1662 = vmatpush1.msra.mxu0 0.0
    %1663 = vmatprep.subr.mxu0 0.0
    %1664 = vmatpush1.msra.mxu0 0.0
    %1665 = vmatprep.subr.mxu0 0.0
    %1666 = vmatpush1.msra.mxu0 0.0
    %1667 = vmatprep.subr.mxu0 0.0
    %1668 = vmatpush1.msra.mxu0 0.0
    %1669 = vmatprep.subr.mxu0 0.0
    %1670 = vmatpush1.msra.mxu0 0.0
    %1671 = vmatprep.subr.mxu0 0.0
    %1672 = vmatpush1.msra.mxu0 0.0
    %1673 = vmatprep.subr.mxu0 0.0
    %1674 = vmatpush1.msra.mxu0 0.0
    %1675 = vmatprep.subr.mxu0 0.0
    %1676 = vmatpush1.msra.mxu0 0.0
    %1677 = vmatprep.subr.mxu0 0.0
    %1678 = vmatpush1.msra.mxu0 0.0
    %1679 = vmatprep.mubr.f32.mxu0 0.0
    %1680 = vmatmul.mubr.f32.gmra.mrb[0].mxu0 %v1609
    %v1681 = vpop.f32.mrb[0].mxu0
    %v1682 = vadd.f32 0.0, %v1681
    %v1683 = vpop.f32.mrb[0].mxu0
    %1684 = vdwg.mxu0
    %v1686 = vcombine.high %v1682, %v1682
    %v1688 = vsel %vm1608, %v1308, 0
    %v1691 = vsel %vm1608, %v1309, 0
    %v1693 = vsel %vm1611, %v1682, 0
    %1695 = vmatprep.subr.mxu0 0.0
    %1696 = vmatpush1.msra.mxu0 %v1693
    %1697 = vmatprep.subr.mxu0 0.0
    %1698 = vmatpush1.msra.mxu0 0.0
    %1699 = vmatprep.subr.mxu0 0.0
    %1700 = vmatpush1.msra.mxu0 0.0
    %1701 = vmatprep.subr.mxu0 0.0
    %1702 = vmatpush1.msra.mxu0 0.0
    %1703 = vmatprep.subr.mxu0 0.0
    %1704 = vmatpush1.msra.mxu0 0.0
    %1705 = vmatprep.subr.mxu0 0.0
    %1706 = vmatpush1.msra.mxu0 0.0
    %1707 = vmatprep.subr.mxu0 0.0
    %1708 = vmatpush1.msra.mxu0 0.0
    %1709 = vmatprep.subr.mxu0 0.0
    %1710 = vmatpush1.msra.mxu0 0.0
    %1711 = vmatprep.subr.mxu0 0.0
    %1712 = vmatpush1.msra.mxu0 0.0
    %1713 = vmatprep.subr.mxu0 0.0
    %1714 = vmatpush1.msra.mxu0 0.0
    %1715 = vmatprep.subr.mxu0 0.0
    %1716 = vmatpush1.msra.mxu0 0.0
    %1717 = vmatprep.subr.mxu0 0.0
    %1718 = vmatpush1.msra.mxu0 0.0
    %1719 = vmatprep.subr.mxu0 0.0
    %1720 = vmatpush1.msra.mxu0 0.0
    %1721 = vmatprep.subr.mxu0 0.0
    %1722 = vmatpush1.msra.mxu0 0.0
    %1723 = vmatprep.subr.mxu0 0.0
    %1724 = vmatpush1.msra.mxu0 0.0
    %1725 = vmatprep.subr.mxu0 0.0
    %1726 = vmatpush1.msra.mxu0 0.0
    %1727 = vmatprep.subr.mxu0 0.0
    %1728 = vmatpush1.msra.mxu0 0.0
    %1729 = vmatprep.subr.mxu0 0.0
    %1730 = vmatpush1.msra.mxu0 0.0
    %1731 = vmatprep.subr.mxu0 0.0
    %1732 = vmatpush1.msra.mxu0 0.0
    %1733 = vmatprep.subr.mxu0 0.0
    %1734 = vmatpush1.msra.mxu0 0.0
    %1735 = vmatprep.subr.mxu0 0.0
    %1736 = vmatpush1.msra.mxu0 0.0
    %1737 = vmatprep.subr.mxu0 0.0
    %1738 = vmatpush1.msra.mxu0 0.0
    %1739 = vmatprep.subr.mxu0 0.0
    %1740 = vmatpush1.msra.mxu0 0.0
    %1741 = vmatprep.subr.mxu0 0.0
    %1742 = vmatpush1.msra.mxu0 0.0
    %1743 = vmatprep.subr.mxu0 0.0
    %1744 = vmatpush1.msra.mxu0 0.0
    %1745 = vmatprep.subr.mxu0 0.0
    %1746 = vmatpush1.msra.mxu0 0.0
    %1747 = vmatprep.subr.mxu0 0.0
    %1748 = vmatpush1.msra.mxu0 0.0
    %1749 = vmatprep.subr.mxu0 0.0
    %1750 = vmatpush1.msra.mxu0 0.0
    %1751 = vmatprep.subr.mxu0 0.0
    %1752 = vmatpush1.msra.mxu0 0.0
    %1753 = vmatprep.subr.mxu0 0.0
    %1754 = vmatpush1.msra.mxu0 0.0
    %1755 = vmatprep.subr.mxu0 0.0
    %1756 = vmatpush1.msra.mxu0 0.0
    %1757 = vmatprep.subr.mxu0 0.0
    %1758 = vmatpush1.msra.mxu0 0.0
    %1759 = vmatprep.mubr.f32.mxu0 0.0
    %1760 = vmatmul.mubr.f32.gmra.mrb[0].mxu0 %v1688
    %v1761 = vpop.f32.mrb[0].mxu0
    %v1762 = vadd.f32 0.0, %v1761
    %v1763 = vpop.f32.mrb[0].mxu0
    %1764 = vmatprep.mubr.f32.mxu0 0.0
    %1765 = vmatmul.mubr.f32.gmra.mrb[0].mxu0 %v1691
    %v1766 = vpop.f32.mrb[0].mxu0
    %v1767 = vadd.f32 0.0, %v1766
    %v1768 = vpop.f32.mrb[0].mxu0
    %1769 = vdwg.mxu0
    %v1770 = vsel %vm1611, %v1686, 0
    %1772 = vmatprep.subr.mxu0 0.0
    %1773 = vmatpush1.msra.mxu0 %v1770
    %1774 = vmatprep.subr.mxu0 0.0
    %1775 = vmatpush1.msra.mxu0 0.0
    %1776 = vmatprep.subr.mxu0 0.0
    %1777 = vmatpush1.msra.mxu0 0.0
    %1778 = vmatprep.subr.mxu0 0.0
    %1779 = vmatpush1.msra.mxu0 0.0
    %1780 = vmatprep.subr.mxu0 0.0
    %1781 = vmatpush1.msra.mxu0 0.0
    %1782 = vmatprep.subr.mxu0 0.0
    %1783 = vmatpush1.msra.mxu0 0.0
    %1784 = vmatprep.subr.mxu0 0.0
    %1785 = vmatpush1.msra.mxu0 0.0
    %1786 = vmatprep.subr.mxu0 0.0
    %1787 = vmatpush1.msra.mxu0 0.0
    %1788 = vmatprep.subr.mxu0 0.0
    %1789 = vmatpush1.msra.mxu0 0.0
    %1790 = vmatprep.subr.mxu0 0.0
    %1791 = vmatpush1.msra.mxu0 0.0
    %1792 = vmatprep.subr.mxu0 0.0
    %1793 = vmatpush1.msra.mxu0 0.0
    %1794 = vmatprep.subr.mxu0 0.0
    %1795 = vmatpush1.msra.mxu0 0.0
    %1796 = vmatprep.subr.mxu0 0.0
    %1797 = vmatpush1.msra.mxu0 0.0
    %1798 = vmatprep.subr.mxu0 0.0
    %1799 = vmatpush1.msra.mxu0 0.0
    %1800 = vmatprep.subr.mxu0 0.0
    %1801 = vmatpush1.msra.mxu0 0.0
    %1802 = vmatprep.subr.mxu0 0.0
    %1803 = vmatpush1.msra.mxu0 0.0
    %1804 = vmatprep.subr.mxu0 0.0
    %1805 = vmatpush1.msra.mxu0 0.0
    %1806 = vmatprep.subr.mxu0 0.0
    %1807 = vmatpush1.msra.mxu0 0.0
    %1808 = vmatprep.subr.mxu0 0.0
    %1809 = vmatpush1.msra.mxu0 0.0
    %1810 = vmatprep.subr.mxu0 0.0
    %1811 = vmatpush1.msra.mxu0 0.0
    %1812 = vmatprep.subr.mxu0 0.0
    %1813 = vmatpush1.msra.mxu0 0.0
    %1814 = vmatprep.subr.mxu0 0.0
    %1815 = vmatpush1.msra.mxu0 0.0
    %1816 = vmatprep.subr.mxu0 0.0
    %1817 = vmatpush1.msra.mxu0 0.0
    %1818 = vmatprep.subr.mxu0 0.0
    %1819 = vmatpush1.msra.mxu0 0.0
    %1820 = vmatprep.subr.mxu0 0.0
    %1821 = vmatpush1.msra.mxu0 0.0
    %1822 = vmatprep.subr.mxu0 0.0
    %1823 = vmatpush1.msra.mxu0 0.0
    %1824 = vmatprep.subr.mxu0 0.0
    %1825 = vmatpush1.msra.mxu0 0.0
    %1826 = vmatprep.subr.mxu0 0.0
    %1827 = vmatpush1.msra.mxu0 0.0
    %1828 = vmatprep.subr.mxu0 0.0
    %1829 = vmatpush1.msra.mxu0 0.0
    %1830 = vmatprep.subr.mxu0 0.0
    %1831 = vmatpush1.msra.mxu0 0.0
    %1832 = vmatprep.subr.mxu0 0.0
    %1833 = vmatpush1.msra.mxu0 0.0
    %1834 = vmatprep.subr.mxu0 0.0
    %1835 = vmatpush1.msra.mxu0 0.0
    %1836 = vmatprep.mubr.f32.mxu0 0.0
    %1837 = vmatmul.mubr.f32.gmra.mrb[0].mxu0 %v1688
    %v1838 = vpop.f32.mrb[0].mxu0
    %v1839 = vadd.f32 0.0, %v1838
    %v1840 = vpop.f32.mrb[0].mxu0
    %1841 = vmatprep.mubr.f32.mxu0 0.0
    %1842 = vmatmul.mubr.f32.gmra.mrb[0].mxu0 %v1691
    %v1843 = vpop.f32.mrb[0].mxu0
    %v1844 = vadd.f32 0.0, %v1843
    %v1845 = vpop.f32.mrb[0].mxu0
    %1846 = vdwg.mxu0
    %s1847 = scalar_lea.vmem [#allocation8], 96
    %1848 = vst.msk [vmem:[%s1847] sm:$0xff] %vm108, %v1762
    %1849 = vst.msk [vmem:[%s1847 + $0x8] sm:$0xff] %vm108, %v1767
    %1850 = vst.msk [vmem:[%s1847 + $0x80] sm:$0xff] %vm108, %v1839
    %1851 = vst.msk [vmem:[%s1847 + $0x88] sm:$0xff] %vm108, %v1844
    %v1852 = vld [vmem:[%s13] sm:$0xff]
    %v1853 = vld [vmem:[%s14] sm:$0xff]
    %v1854 = vld [vmem:[%s14 + $0x8] sm:$0xff]
    %v1855 = vld [vmem:[%s15] sm:$0xff]
    %v1856 = vld [vmem:[%s15 + $0x8] sm:$0xff]
    %v1857 = vld [vmem:[%s16] sm:$0xff]
    %1858 = vmatprep.subr.mxu0 0.0
    %1859 = vmatpush1.msra.mxu0 %v1853
    %1860 = vmatprep.subr.mxu0 0.0
    %1861 = vmatpush1.msra.mxu0 %v1854
    %1862 = vmatprep.subr.mxu0 0.0
    %1863 = vmatpush1.msra.mxu0 0.0
    %1864 = vmatprep.subr.mxu0 0.0
    %1865 = vmatpush1.msra.mxu0 0.0
    %1866 = vmatprep.subr.mxu0 0.0
    %1867 = vmatpush1.msra.mxu0 0.0
    %1868 = vmatprep.subr.mxu0 0.0
    %1869 = vmatpush1.msra.mxu0 0.0
    %1870 = vmatprep.subr.mxu0 0.0
    %1871 = vmatpush1.msra.mxu0 0.0
    %1872 = vmatprep.subr.mxu0 0.0
    %1873 = vmatpush1.msra.mxu0 0.0
    %1874 = vmatprep.subr.mxu0 0.0
    %1875 = vmatpush1.msra.mxu0 0.0
    %1876 = vmatprep.subr.mxu0 0.0
    %1877 = vmatpush1.msra.mxu0 0.0
    %1878 = vmatprep.subr.mxu0 0.0
    %1879 = vmatpush1.msra.mxu0 0.0
    %1880 = vmatprep.subr.mxu0 0.0
    %1881 = vmatpush1.msra.mxu0 0.0
    %1882 = vmatprep.subr.mxu0 0.0
    %1883 = vmatpush1.msra.mxu0 0.0
    %1884 = vmatprep.subr.mxu0 0.0
    %1885 = vmatpush1.msra.mxu0 0.0
    %1886 = vmatprep.subr.mxu0 0.0
    %1887 = vmatpush1.msra.mxu0 0.0
    %1888 = vmatprep.subr.mxu0 0.0
    %1889 = vmatpush1.msra.mxu0 0.0
    %1890 = vmatprep.subr.mxu0 0.0
    %1891 = vmatpush1.msra.mxu0 0.0
    %1892 = vmatprep.subr.mxu0 0.0
    %1893 = vmatpush1.msra.mxu0 0.0
    %1894 = vmatprep.subr.mxu0 0.0
    %1895 = vmatpush1.msra.mxu0 0.0
    %1896 = vmatprep.subr.mxu0 0.0
    %1897 = vmatpush1.msra.mxu0 0.0
    %1898 = vmatprep.subr.mxu0 0.0
    %1899 = vmatpush1.msra.mxu0 0.0
    %1900 = vmatprep.subr.mxu0 0.0
    %1901 = vmatpush1.msra.mxu0 0.0
    %1902 = vmatprep.subr.mxu0 0.0
    %1903 = vmatpush1.msra.mxu0 0.0
    %1904 = vmatprep.subr.mxu0 0.0
    %1905 = vmatpush1.msra.mxu0 0.0
    %1906 = vmatprep.subr.mxu0 0.0
    %1907 = vmatpush1.msra.mxu0 0.0
    %1908 = vmatprep.subr.mxu0 0.0
    %1909 = vmatpush1.msra.mxu0 0.0
    %1910 = vmatprep.subr.mxu0 0.0
    %1911 = vmatpush1.msra.mxu0 0.0
    %1912 = vmatprep.subr.mxu0 0.0
    %1913 = vmatpush1.msra.mxu0 0.0
    %1914 = vmatprep.subr.mxu0 0.0
    %1915 = vmatpush1.msra.mxu0 0.0
    %1916 = vmatprep.subr.mxu0 0.0
    %1917 = vmatpush1.msra.mxu0 0.0
    %1918 = vmatprep.subr.mxu0 0.0
    %1919 = vmatpush1.msra.mxu0 0.0
    %1920 = vmatprep.subr.mxu0 0.0
    %1921 = vmatpush1.msra.mxu0 0.0
    %1922 = vmatprep.mubr.f32.mxu0 0.0
    %1923 = vmatmul.mubr.f32.gmra.mrb[0].mxu0 %v132
    %v1924 = vpop.f32.mrb[0].mxu0
    %v1925 = vadd.f32 0.0, %v1924
    %v1926 = vpop.f32.mrb[0].mxu0
    %1927 = vmatprep.mubr.f32.mxu0 0.0
    %1928 = vmatmul.mubr.f32.gmra.mrb[0].mxu0 %v135
    %v1929 = vpop.f32.mrb[0].mxu0
    %v1930 = vadd.f32 0.0, %v1929
    %v1931 = vpop.f32.mrb[0].mxu0
    %1932 = vmatprep.mubr.f32.mxu0 0.0
    %1933 = vmatmul.mubr.f32.gmra.mrb[0].mxu0 %v138
    %v1934 = vpop.f32.mrb[0].mxu0
    %v1935 = vadd.f32 0.0, %v1934
    %v1936 = vpop.f32.mrb[0].mxu0
    %1937 = vmatprep.mubr.f32.mxu0 0.0
    %1938 = vmatmul.mubr.f32.gmra.mrb[0].mxu0 %v141
    %v1939 = vpop.f32.mrb[0].mxu0
    %v1940 = vadd.f32 0.0, %v1939
    %v1941 = vpop.f32.mrb[0].mxu0
    %1942 = vmatprep.mubr.f32.mxu0 0.0
    %1943 = vmatmul.mubr.f32.gmra.mrb[0].mxu0 %v144
    %v1944 = vpop.f32.mrb[0].mxu0
    %v1945 = vadd.f32 0.0, %v1944
    %v1946 = vpop.f32.mrb[0].mxu0
    %1947 = vmatprep.mubr.f32.mxu0 0.0
    %1948 = vmatmul.mubr.f32.gmra.mrb[0].mxu0 %v147
    %v1949 = vpop.f32.mrb[0].mxu0
    %v1950 = vadd.f32 0.0, %v1949
    %v1951 = vpop.f32.mrb[0].mxu0
    %1952 = vmatprep.mubr.f32.mxu0 0.0
    %1953 = vmatmul.mubr.f32.gmra.mrb[0].mxu0 %v150
    %v1954 = vpop.f32.mrb[0].mxu0
    %v1955 = vadd.f32 0.0, %v1954
    %v1956 = vpop.f32.mrb[0].mxu0
    %1957 = vmatprep.mubr.f32.mxu0 0.0
    %1958 = vmatmul.mubr.f32.gmra.mrb[0].mxu0 %v153
    %v1959 = vpop.f32.mrb[0].mxu0
    %v1960 = vadd.f32 0.0, %v1959
    %v1961 = vpop.f32.mrb[0].mxu0
    %1962 = vmatprep.mubr.f32.mxu0 0.0
    %1963 = vmatmul.mubr.f32.gmra.mrb[0].mxu0 %v156
    %v1964 = vpop.f32.mrb[0].mxu0
    %v1965 = vadd.f32 0.0, %v1964
    %v1966 = vpop.f32.mrb[0].mxu0
    %1967 = vmatprep.mubr.f32.mxu0 0.0
    %1968 = vmatmul.mubr.f32.gmra.mrb[0].mxu0 %v159
    %v1969 = vpop.f32.mrb[0].mxu0
    %v1970 = vadd.f32 0.0, %v1969
    %v1971 = vpop.f32.mrb[0].mxu0
    %1972 = vmatprep.mubr.f32.mxu0 0.0
    %1973 = vmatmul.mubr.f32.gmra.mrb[0].mxu0 %v162
    %v1974 = vpop.f32.mrb[0].mxu0
    %v1975 = vadd.f32 0.0, %v1974
    %v1976 = vpop.f32.mrb[0].mxu0
    %1977 = vmatprep.mubr.f32.mxu0 0.0
    %1978 = vmatmul.mubr.f32.gmra.mrb[0].mxu0 %v165
    %v1979 = vpop.f32.mrb[0].mxu0
    %v1980 = vadd.f32 0.0, %v1979
    %v1981 = vpop.f32.mrb[0].mxu0
    %1982 = vmatprep.mubr.f32.mxu0 0.0
    %1983 = vmatmul.mubr.f32.gmra.mrb[0].mxu0 %v168
    %v1984 = vpop.f32.mrb[0].mxu0
    %v1985 = vadd.f32 0.0, %v1984
    %v1986 = vpop.f32.mrb[0].mxu0
    %1987 = vmatprep.mubr.f32.mxu0 0.0
    %1988 = vmatmul.mubr.f32.gmra.mrb[0].mxu0 %v171
    %v1989 = vpop.f32.mrb[0].mxu0
    %v1990 = vadd.f32 0.0, %v1989
    %v1991 = vpop.f32.mrb[0].mxu0
    %1992 = vmatprep.mubr.f32.mxu0 0.0
    %1993 = vmatmul.mubr.f32.gmra.mrb[0].mxu0 %v174
    %v1994 = vpop.f32.mrb[0].mxu0
    %v1995 = vadd.f32 0.0, %v1994
    %v1996 = vpop.f32.mrb[0].mxu0
    %1997 = vmatprep.mubr.f32.mxu0 0.0
    %1998 = vmatmul.mubr.f32.gmra.mrb[0].mxu0 %v177
    %v1999 = vpop.f32.mrb[0].mxu0
    %v2000 = vadd.f32 0.0, %v1999
    %v2001 = vpop.f32.mrb[0].mxu0
    %2002 = vdwg.mxu0
    %v2004 = vsel %vm324, %v1852, 0
    %2006 = vmatprep.subr.mxu0 0.0
    %2007 = vmatpush1.msra.mxu0 %v1925
    %2008 = vmatprep.subr.mxu0 0.0
    %2009 = vmatpush1.msra.mxu0 %v1930
    %2010 = vmatprep.subr.mxu0 0.0
    %2011 = vmatpush1.msra.mxu0 %v1935
    %2012 = vmatprep.subr.mxu0 0.0
    %2013 = vmatpush1.msra.mxu0 %v1940
    %2014 = vmatprep.subr.mxu0 0.0
    %2015 = vmatpush1.msra.mxu0 %v1945
    %2016 = vmatprep.subr.mxu0 0.0
    %2017 = vmatpush1.msra.mxu0 %v1950
    %2018 = vmatprep.subr.mxu0 0.0
    %2019 = vmatpush1.msra.mxu0 %v1955
    %2020 = vmatprep.subr.mxu0 0.0
    %2021 = vmatpush1.msra.mxu0 %v1960
    %2022 = vmatprep.subr.mxu0 0.0
    %2023 = vmatpush1.msra.mxu0 0.0
    %2024 = vmatprep.subr.mxu0 0.0
    %2025 = vmatpush1.msra.mxu0 0.0
    %2026 = vmatprep.subr.mxu0 0.0
    %2027 = vmatpush1.msra.mxu0 0.0
    %2028 = vmatprep.subr.mxu0 0.0
    %2029 = vmatpush1.msra.mxu0 0.0
    %2030 = vmatprep.subr.mxu0 0.0
    %2031 = vmatpush1.msra.mxu0 0.0
    %2032 = vmatprep.subr.mxu0 0.0
    %2033 = vmatpush1.msra.mxu0 0.0
    %2034 = vmatprep.subr.mxu0 0.0
    %2035 = vmatpush1.msra.mxu0 0.0
    %2036 = vmatprep.subr.mxu0 0.0
    %2037 = vmatpush1.msra.mxu0 0.0
    %2038 = vmatprep.subr.mxu0 0.0
    %2039 = vmatpush1.msra.mxu0 0.0
    %2040 = vmatprep.subr.mxu0 0.0
    %2041 = vmatpush1.msra.mxu0 0.0
    %2042 = vmatprep.subr.mxu0 0.0
    %2043 = vmatpush1.msra.mxu0 0.0
    %2044 = vmatprep.subr.mxu0 0.0
    %2045 = vmatpush1.msra.mxu0 0.0
    %2046 = vmatprep.subr.mxu0 0.0
    %2047 = vmatpush1.msra.mxu0 0.0
    %2048 = vmatprep.subr.mxu0 0.0
    %2049 = vmatpush1.msra.mxu0 0.0
    %2050 = vmatprep.subr.mxu0 0.0
    %2051 = vmatpush1.msra.mxu0 0.0
    %2052 = vmatprep.subr.mxu0 0.0
    %2053 = vmatpush1.msra.mxu0 0.0
    %2054 = vmatprep.subr.mxu0 0.0
    %2055 = vmatpush1.msra.mxu0 0.0
    %2056 = vmatprep.subr.mxu0 0.0
    %2057 = vmatpush1.msra.mxu0 0.0
    %2058 = vmatprep.subr.mxu0 0.0
    %2059 = vmatpush1.msra.mxu0 0.0
    %2060 = vmatprep.subr.mxu0 0.0
    %2061 = vmatpush1.msra.mxu0 0.0
    %2062 = vmatprep.subr.mxu0 0.0
    %2063 = vmatpush1.msra.mxu0 0.0
    %2064 = vmatprep.subr.mxu0 0.0
    %2065 = vmatpush1.msra.mxu0 0.0
    %2066 = vmatprep.subr.mxu0 0.0
    %2067 = vmatpush1.msra.mxu0 0.0
    %2068 = vmatprep.subr.mxu0 0.0
    %2069 = vmatpush1.msra.mxu0 0.0
    %2070 = vmatprep.mubr.f32.mxu0 0.0
    %2071 = vmatmul.mubr.f32.gmra.mrb[0].mxu0 %v2004
    %v2072 = vpop.f32.mrb[0].mxu0
    %v2073 = vadd.f32 0.0, %v2072
    %v2074 = vpop.f32.mrb[0].mxu0
    %2075 = vdwg.mxu0
    %2076 = vmatprep.subr.mxu0 0.0
    %2077 = vmatpush1.msra.mxu0 %v1965
    %2078 = vmatprep.subr.mxu0 0.0
    %2079 = vmatpush1.msra.mxu0 %v1970
    %2080 = vmatprep.subr.mxu0 0.0
    %2081 = vmatpush1.msra.mxu0 %v1975
    %2082 = vmatprep.subr.mxu0 0.0
    %2083 = vmatpush1.msra.mxu0 %v1980
    %2084 = vmatprep.subr.mxu0 0.0
    %2085 = vmatpush1.msra.mxu0 %v1985
    %2086 = vmatprep.subr.mxu0 0.0
    %2087 = vmatpush1.msra.mxu0 %v1990
    %2088 = vmatprep.subr.mxu0 0.0
    %2089 = vmatpush1.msra.mxu0 %v1995
    %2090 = vmatprep.subr.mxu0 0.0
    %2091 = vmatpush1.msra.mxu0 %v2000
    %2092 = vmatprep.subr.mxu0 0.0
    %2093 = vmatpush1.msra.mxu0 0.0
    %2094 = vmatprep.subr.mxu0 0.0
    %2095 = vmatpush1.msra.mxu0 0.0
    %2096 = vmatprep.subr.mxu0 0.0
    %2097 = vmatpush1.msra.mxu0 0.0
    %2098 = vmatprep.subr.mxu0 0.0
    %2099 = vmatpush1.msra.mxu0 0.0
    %2100 = vmatprep.subr.mxu0 0.0
    %2101 = vmatpush1.msra.mxu0 0.0
    %2102 = vmatprep.subr.mxu0 0.0
    %2103 = vmatpush1.msra.mxu0 0.0
    %2104 = vmatprep.subr.mxu0 0.0
    %2105 = vmatpush1.msra.mxu0 0.0
    %2106 = vmatprep.subr.mxu0 0.0
    %2107 = vmatpush1.msra.mxu0 0.0
    %2108 = vmatprep.subr.mxu0 0.0
    %2109 = vmatpush1.msra.mxu0 0.0
    %2110 = vmatprep.subr.mxu0 0.0
    %2111 = vmatpush1.msra.mxu0 0.0
    %2112 = vmatprep.subr.mxu0 0.0
    %2113 = vmatpush1.msra.mxu0 0.0
    %2114 = vmatprep.subr.mxu0 0.0
    %2115 = vmatpush1.msra.mxu0 0.0
    %2116 = vmatprep.subr.mxu0 0.0
    %2117 = vmatpush1.msra.mxu0 0.0
    %2118 = vmatprep.subr.mxu0 0.0
    %2119 = vmatpush1.msra.mxu0 0.0
    %2120 = vmatprep.subr.mxu0 0.0
    %2121 = vmatpush1.msra.mxu0 0.0
    %2122 = vmatprep.subr.mxu0 0.0
    %2123 = vmatpush1.msra.mxu0 0.0
    %2124 = vmatprep.subr.mxu0 0.0
    %2125 = vmatpush1.msra.mxu0 0.0
    %2126 = vmatprep.subr.mxu0 0.0
    %2127 = vmatpush1.msra.mxu0 0.0
    %2128 = vmatprep.subr.mxu0 0.0
    %2129 = vmatpush1.msra.mxu0 0.0
    %2130 = vmatprep.subr.mxu0 0.0
    %2131 = vmatpush1.msra.mxu0 0.0
    %2132 = vmatprep.subr.mxu0 0.0
    %2133 = vmatpush1.msra.mxu0 0.0
    %2134 = vmatprep.subr.mxu0 0.0
    %2135 = vmatpush1.msra.mxu0 0.0
    %2136 = vmatprep.subr.mxu0 0.0
    %2137 = vmatpush1.msra.mxu0 0.0
    %2138 = vmatprep.subr.mxu0 0.0
    %2139 = vmatpush1.msra.mxu0 0.0
    %2140 = vmatprep.mubr.f32.mxu0 0.0
    %2141 = vmatmul.mubr.f32.gmra.mrb[0].mxu0 %v2004
    %v2142 = vpop.f32.mrb[0].mxu0
    %v2143 = vadd.f32 0.0, %v2142
    %v2144 = vpop.f32.mrb[0].mxu0
    %2145 = vdwg.mxu0
    %vm2146 = vcmp.ge.f32.partialorder %v2073, 0.0
    %vm2147 = vcmp.ge.f32.partialorder %v2143, 0.0
    %v2148 = vmul.f32 %v2073, 0.2
    %v2149 = vmul.f32 %v2143, 0.2
    %v2150 = vsel %vm2146, %v2073, %v2148
    %v2151 = vsel %vm2147, %v2143, %v2149
    %vm2152 = vcmask 64512
    %v2154 = vsel %vm2152, %v2150, 0
    %v2157 = vsel %vm2152, %v2151, 0
    %2159 = vmatprep.subr.mxu0 0.0
    %2160 = vmatpush1.msra.mxu0 %v1857
    %2161 = vmatprep.subr.mxu0 0.0
    %2162 = vmatpush1.msra.mxu0 0.0
    %2163 = vmatprep.subr.mxu0 0.0
    %2164 = vmatpush1.msra.mxu0 0.0
    %2165 = vmatprep.subr.mxu0 0.0
    %2166 = vmatpush1.msra.mxu0 0.0
    %2167 = vmatprep.subr.mxu0 0.0
    %2168 = vmatpush1.msra.mxu0 0.0
    %2169 = vmatprep.subr.mxu0 0.0
    %2170 = vmatpush1.msra.mxu0 0.0
    %2171 = vmatprep.subr.mxu0 0.0
    %2172 = vmatpush1.msra.mxu0 0.0
    %2173 = vmatprep.subr.mxu0 0.0
    %2174 = vmatpush1.msra.mxu0 0.0
    %2175 = vmatprep.subr.mxu0 0.0
    %2176 = vmatpush1.msra.mxu0 0.0
    %2177 = vmatprep.subr.mxu0 0.0
    %2178 = vmatpush1.msra.mxu0 0.0
    %2179 = vmatprep.subr.mxu0 0.0
    %2180 = vmatpush1.msra.mxu0 0.0
    %2181 = vmatprep.subr.mxu0 0.0
    %2182 = vmatpush1.msra.mxu0 0.0
    %2183 = vmatprep.subr.mxu0 0.0
    %2184 = vmatpush1.msra.mxu0 0.0
    %2185 = vmatprep.subr.mxu0 0.0
    %2186 = vmatpush1.msra.mxu0 0.0
    %2187 = vmatprep.subr.mxu0 0.0
    %2188 = vmatpush1.msra.mxu0 0.0
    %2189 = vmatprep.subr.mxu0 0.0
    %2190 = vmatpush1.msra.mxu0 0.0
    %2191 = vmatprep.subr.mxu0 0.0
    %2192 = vmatpush1.msra.mxu0 0.0
    %2193 = vmatprep.subr.mxu0 0.0
    %2194 = vmatpush1.msra.mxu0 0.0
    %2195 = vmatprep.subr.mxu0 0.0
    %2196 = vmatpush1.msra.mxu0 0.0
    %2197 = vmatprep.subr.mxu0 0.0
    %2198 = vmatpush1.msra.mxu0 0.0
    %2199 = vmatprep.subr.mxu0 0.0
    %2200 = vmatpush1.msra.mxu0 0.0
    %2201 = vmatprep.subr.mxu0 0.0
    %2202 = vmatpush1.msra.mxu0 0.0
    %2203 = vmatprep.subr.mxu0 0.0
    %2204 = vmatpush1.msra.mxu0 0.0
    %2205 = vmatprep.subr.mxu0 0.0
    %2206 = vmatpush1.msra.mxu0 0.0
    %2207 = vmatprep.subr.mxu0 0.0
    %2208 = vmatpush1.msra.mxu0 0.0
    %2209 = vmatprep.subr.mxu0 0.0
    %2210 = vmatpush1.msra.mxu0 0.0
    %2211 = vmatprep.subr.mxu0 0.0
    %2212 = vmatpush1.msra.mxu0 0.0
    %2213 = vmatprep.subr.mxu0 0.0
    %2214 = vmatpush1.msra.mxu0 0.0
    %2215 = vmatprep.subr.mxu0 0.0
    %2216 = vmatpush1.msra.mxu0 0.0
    %2217 = vmatprep.subr.mxu0 0.0
    %2218 = vmatpush1.msra.mxu0 0.0
    %2219 = vmatprep.subr.mxu0 0.0
    %2220 = vmatpush1.msra.mxu0 0.0
    %2221 = vmatprep.subr.mxu0 0.0
    %2222 = vmatpush1.msra.mxu0 0.0
    %2223 = vmatprep.mubr.f32.mxu0 0.0
    %2224 = vmatmul.mubr.f32.gmra.mrb[0].mxu0 %v2154
    %v2225 = vpop.f32.mrb[0].mxu0
    %v2226 = vadd.f32 0.0, %v2225
    %v2227 = vpop.f32.mrb[0].mxu0
    %2228 = vmatprep.mubr.f32.mxu0 0.0
    %2229 = vmatmul.mubr.f32.gmra.mrb[0].mxu0 %v2157
    %v2230 = vpop.f32.mrb[0].mxu0
    %v2231 = vadd.f32 0.0, %v2230
    %v2232 = vpop.f32.mrb[0].mxu0
    %2233 = vdwg.mxu0
    %v2235 = vsel %vm2152, %v1855, 0
    %v2238 = vsel %vm2152, %v1856, 0
    %2240 = vmatprep.subr.mxu0 0.0
    %2241 = vmatpush1.msra.mxu0 %v2226
    %2242 = vmatprep.subr.mxu0 0.0
    %2243 = vmatpush1.msra.mxu0 0.0
    %2244 = vmatprep.subr.mxu0 0.0
    %2245 = vmatpush1.msra.mxu0 0.0
    %2246 = vmatprep.subr.mxu0 0.0
    %2247 = vmatpush1.msra.mxu0 0.0
    %2248 = vmatprep.subr.mxu0 0.0
    %2249 = vmatpush1.msra.mxu0 0.0
    %2250 = vmatprep.subr.mxu0 0.0
    %2251 = vmatpush1.msra.mxu0 0.0
    %2252 = vmatprep.subr.mxu0 0.0
    %2253 = vmatpush1.msra.mxu0 0.0
    %2254 = vmatprep.subr.mxu0 0.0
    %2255 = vmatpush1.msra.mxu0 0.0
    %2256 = vmatprep.subr.mxu0 0.0
    %2257 = vmatpush1.msra.mxu0 0.0
    %2258 = vmatprep.subr.mxu0 0.0
    %2259 = vmatpush1.msra.mxu0 0.0
    %2260 = vmatprep.subr.mxu0 0.0
    %2261 = vmatpush1.msra.mxu0 0.0
    %2262 = vmatprep.subr.mxu0 0.0
    %2263 = vmatpush1.msra.mxu0 0.0
    %2264 = vmatprep.subr.mxu0 0.0
    %2265 = vmatpush1.msra.mxu0 0.0
    %2266 = vmatprep.subr.mxu0 0.0
    %2267 = vmatpush1.msra.mxu0 0.0
    %2268 = vmatprep.subr.mxu0 0.0
    %2269 = vmatpush1.msra.mxu0 0.0
    %2270 = vmatprep.subr.mxu0 0.0
    %2271 = vmatpush1.msra.mxu0 0.0
    %2272 = vmatprep.subr.mxu0 0.0
    %2273 = vmatpush1.msra.mxu0 0.0
    %2274 = vmatprep.subr.mxu0 0.0
    %2275 = vmatpush1.msra.mxu0 0.0
    %2276 = vmatprep.subr.mxu0 0.0
    %2277 = vmatpush1.msra.mxu0 0.0
    %2278 = vmatprep.subr.mxu0 0.0
    %2279 = vmatpush1.msra.mxu0 0.0
    %2280 = vmatprep.subr.mxu0 0.0
    %2281 = vmatpush1.msra.mxu0 0.0
    %2282 = vmatprep.subr.mxu0 0.0
    %2283 = vmatpush1.msra.mxu0 0.0
    %2284 = vmatprep.subr.mxu0 0.0
    %2285 = vmatpush1.msra.mxu0 0.0
    %2286 = vmatprep.subr.mxu0 0.0
    %2287 = vmatpush1.msra.mxu0 0.0
    %2288 = vmatprep.subr.mxu0 0.0
    %2289 = vmatpush1.msra.mxu0 0.0
    %2290 = vmatprep.subr.mxu0 0.0
    %2291 = vmatpush1.msra.mxu0 0.0
    %2292 = vmatprep.subr.mxu0 0.0
    %2293 = vmatpush1.msra.mxu0 0.0
    %2294 = vmatprep.subr.mxu0 0.0
    %2295 = vmatpush1.msra.mxu0 0.0
    %2296 = vmatprep.subr.mxu0 0.0
    %2297 = vmatpush1.msra.mxu0 0.0
    %2298 = vmatprep.subr.mxu0 0.0
    %2299 = vmatpush1.msra.mxu0 0.0
    %2300 = vmatprep.subr.mxu0 0.0
    %2301 = vmatpush1.msra.mxu0 0.0
    %2302 = vmatprep.subr.mxu0 0.0
    %2303 = vmatpush1.msra.mxu0 0.0
    %2304 = vmatprep.mubr.f32.mxu0 0.0
    %2305 = vmatmul.mubr.f32.gmra.mrb[0].mxu0 %v2235
    %v2306 = vpop.f32.mrb[0].mxu0
    %v2307 = vadd.f32 0.0, %v2306
    %v2308 = vpop.f32.mrb[0].mxu0
    %2309 = vmatprep.mubr.f32.mxu0 0.0
    %2310 = vmatmul.mubr.f32.gmra.mrb[0].mxu0 %v2238
    %v2311 = vpop.f32.mrb[0].mxu0
    %v2312 = vadd.f32 0.0, %v2311
    %v2313 = vpop.f32.mrb[0].mxu0
    %2314 = vdwg.mxu0
    %2315 = vmatprep.subr.mxu0 0.0
    %2316 = vmatpush1.msra.mxu0 %v2231
    %2317 = vmatprep.subr.mxu0 0.0
    %2318 = vmatpush1.msra.mxu0 0.0
    %2319 = vmatprep.subr.mxu0 0.0
    %2320 = vmatpush1.msra.mxu0 0.0
    %2321 = vmatprep.subr.mxu0 0.0
    %2322 = vmatpush1.msra.mxu0 0.0
    %2323 = vmatprep.subr.mxu0 0.0
    %2324 = vmatpush1.msra.mxu0 0.0
    %2325 = vmatprep.subr.mxu0 0.0
    %2326 = vmatpush1.msra.mxu0 0.0
    %2327 = vmatprep.subr.mxu0 0.0
    %2328 = vmatpush1.msra.mxu0 0.0
    %2329 = vmatprep.subr.mxu0 0.0
    %2330 = vmatpush1.msra.mxu0 0.0
    %2331 = vmatprep.subr.mxu0 0.0
    %2332 = vmatpush1.msra.mxu0 0.0
    %2333 = vmatprep.subr.mxu0 0.0
    %2334 = vmatpush1.msra.mxu0 0.0
    %2335 = vmatprep.subr.mxu0 0.0
    %2336 = vmatpush1.msra.mxu0 0.0
    %2337 = vmatprep.subr.mxu0 0.0
    %2338 = vmatpush1.msra.mxu0 0.0
    %2339 = vmatprep.subr.mxu0 0.0
    %2340 = vmatpush1.msra.mxu0 0.0
    %2341 = vmatprep.subr.mxu0 0.0
    %2342 = vmatpush1.msra.mxu0 0.0
    %2343 = vmatprep.subr.mxu0 0.0
    %2344 = vmatpush1.msra.mxu0 0.0
    %2345 = vmatprep.subr.mxu0 0.0
    %2346 = vmatpush1.msra.mxu0 0.0
    %2347 = vmatprep.subr.mxu0 0.0
    %2348 = vmatpush1.msra.mxu0 0.0
    %2349 = vmatprep.subr.mxu0 0.0
    %2350 = vmatpush1.msra.mxu0 0.0
    %2351 = vmatprep.subr.mxu0 0.0
    %2352 = vmatpush1.msra.mxu0 0.0
    %2353 = vmatprep.subr.mxu0 0.0
    %2354 = vmatpush1.msra.mxu0 0.0
    %2355 = vmatprep.subr.mxu0 0.0
    %2356 = vmatpush1.msra.mxu0 0.0
    %2357 = vmatprep.subr.mxu0 0.0
    %2358 = vmatpush1.msra.mxu0 0.0
    %2359 = vmatprep.subr.mxu0 0.0
    %2360 = vmatpush1.msra.mxu0 0.0
    %2361 = vmatprep.subr.mxu0 0.0
    %2362 = vmatpush1.msra.mxu0 0.0
    %2363 = vmatprep.subr.mxu0 0.0
    %2364 = vmatpush1.msra.mxu0 0.0
    %2365 = vmatprep.subr.mxu0 0.0
    %2366 = vmatpush1.msra.mxu0 0.0
    %2367 = vmatprep.subr.mxu0 0.0
    %2368 = vmatpush1.msra.mxu0 0.0
    %2369 = vmatprep.subr.mxu0 0.0
    %2370 = vmatpush1.msra.mxu0 0.0
    %2371 = vmatprep.subr.mxu0 0.0
    %2372 = vmatpush1.msra.mxu0 0.0
    %2373 = vmatprep.subr.mxu0 0.0
    %2374 = vmatpush1.msra.mxu0 0.0
    %2375 = vmatprep.subr.mxu0 0.0
    %2376 = vmatpush1.msra.mxu0 0.0
    %2377 = vmatprep.subr.mxu0 0.0
    %2378 = vmatpush1.msra.mxu0 0.0
    %2379 = vmatprep.mubr.f32.mxu0 0.0
    %2380 = vmatmul.mubr.f32.gmra.mrb[0].mxu0 %v2235
    %v2381 = vpop.f32.mrb[0].mxu0
    %v2382 = vadd.f32 0.0, %v2381
    %v2383 = vpop.f32.mrb[0].mxu0
    %2384 = vmatprep.mubr.f32.mxu0 0.0
    %2385 = vmatmul.mubr.f32.gmra.mrb[0].mxu0 %v2238
    %v2386 = vpop.f32.mrb[0].mxu0
    %v2387 = vadd.f32 0.0, %v2386
    %v2388 = vpop.f32.mrb[0].mxu0
    %2389 = vdwg.mxu0
    %s2390 = scalar_lea.vmem [#allocation8], 112
    %2391 = vst.msk [vmem:[%s2390] sm:$0xff] %vm108, %v2307
    %2392 = vst.msk [vmem:[%s2390 + $0x8] sm:$0xff] %vm108, %v2312
    %2393 = vst.msk [vmem:[%s2390 + $0x80] sm:$0xff] %vm108, %v2382
    %2394 = vst.msk [vmem:[%s2390 + $0x88] sm:$0xff] %vm108, %v2387
    // Predicated region
    $region82: #{tpu_custom_call.1} parent=1 // pred_check
      _
    $region83: #{tpu_custom_call.1} parent=1 // pred_check_branch
      %2396 = sbr.rel (0) target = $region85
    $region84: #{tpu_custom_call.1} parent=1 // pred_region
      %s2398 = ssub.s32 4096, 4096
      %2399 = vsyncadd [#allocation4], %s2398
      %s2400 = sshll.u32 [#allocation8], 4
      %s2401 = int_to_ptr.vmem [resolvable:$true] %s2400
      %2406 = dma.vmem_to_hbm [thread:$0]  %s2401, 4096, %s17, [#allocation4], 128, 128, 8
    $region85: #{tpu_custom_call.1} parent=1 // pred_fallthru
      _
    // Predicated region
    $region86: #{tpu_custom_call.1} parent=1 // pred_check
      _
    $region87: #{tpu_custom_call.1} parent=1 // pred_check_branch
      %2408 = sbr.rel (0) target = $region89
    $region88: #{tpu_custom_call.1} parent=1 // pred_region
      %2409 = dma.done [#allocation4], 4096
    $region89: #{tpu_custom_call.1} parent=1 // pred_fallthru
      _
    %2410 = vsyncpa [#allocation3], 1
    %2411 = vsyncpa [#allocation6], 1
    %2412 = vsyncpa [#allocation4], 1

</llo_original>
